<compile_context>
chip_gen: v6e
topology: v6e:2x2x1
jax: 0.10.0
libtpu: 0.0.40
codegen_flags: <defaults>
</compile_context>

<pallas_src>
import functools

import jax
import jax.numpy as jnp
import numpy as np
from jax import lax
from jax.experimental import pallas as pl
from jax.experimental.pallas import tpu as pltpu


def _round_up(v, m):
    return (v + m - 1) // m * m


# ----------------------------- Pallas kernel --------------------------------

def _bigru_kernel(x_ref, wih_ref, whh_ref, bih_ref, bhh_ref,
                  out_ref, h_scr, gi_scr, *, seq_len, mask_time):
    d = pl.program_id(0)          # 0 = forward direction, 1 = backward
    c = pl.program_id(1)          # position in this direction's chunk order
    nc = pl.num_programs(1)

    Tc, Bp, Ip = x_ref.shape
    Hp = whh_ref.shape[0]
    H3 = 3 * Hp

    # ---- batched input projection for the whole chunk (one MXU matmul) ----
    x2d = x_ref[...].reshape(Tc * Bp, Ip)            # aligned (8,128) no-op
    gi = jnp.dot(x2d, wih_ref[...], preferred_element_type=jnp.float32)
    gi_scr[...] = (gi + bih_ref[...]).reshape(Tc, Bp, H3)   # fold b_ih once

    whh = whh_ref[...]
    bhh = jnp.broadcast_to(bhh_ref[...], (Bp, H3))   # hoisted broadcast

    # Initial hidden state: zeros at the first chunk of each direction,
    # otherwise carried from the previous chunk via VMEM scratch.
    @pl.when(c == 0)
    def _():
        h_scr[...] = jnp.zeros_like(h_scr)

    def run_chunk(reverse):
        # Which original time-block this grid step handles
        # (backward direction visits chunks right->left).
        tb = (nc - 1 - c) if reverse else c
        t_base = tb * Tc

        h = h_scr[...]
        step_order = range(Tc - 1, -1, -1) if reverse else range(Tc)
        # Fully unrolled recurrence with *static* indices: only the small
        # h @ W_hh matmul plus VPU/EUP gate math per step.
        for j in step_order:
            gi_t = gi_scr[j]                          # (Bp, 3*Hp), static view

            gh = jnp.dot(h.astype(whh.dtype), whh,
                         preferred_element_type=jnp.float32) + bhh

            r = jax.nn.sigmoid(gi_t[:, 0:Hp] + gh[:, 0:Hp])
            z = jax.nn.sigmoid(gi_t[:, Hp:2 * Hp] + gh[:, Hp:2 * Hp])
            n = jnp.tanh(gi_t[:, 2 * Hp:3 * Hp] + r * gh[:, 2 * Hp:3 * Hp])
            h_new = n + z * (h - n)                   # == (1-z)*n + z*h

            if mask_time:
                # keep h unchanged on padded timesteps (t >= true seq length)
                h_new = jnp.where(t_base + j < seq_len, h_new, h)

            out_ref[j] = h_new.astype(out_ref.dtype)  # static, lane-dense store
            h = h_new

        h_scr[...] = h

    @pl.when(d == 0)
    def _():
        run_chunk(reverse=False)

    @pl.when(d == 1)
    def _():
        run_chunk(reverse=True)


# ------------------------ parameter packing (padded) -------------------------

def _prepare_params(params, I, H, Ip, Hp, matmul_dtype):
    """Torch-layout params -> padded, transposed, direction-stacked tensors.

    Per-gate columns are padded H -> Hp so every gate slab starts at a
    128-aligned lane offset; padded columns/rows are zero, which keeps the
    padded hidden lanes exactly 0 through the recurrence.
    """
    def prep_w(w, K, Kp):                     # w: (3H, K) -> (Kp, 3*Hp)
        wt = w.T.astype(jnp.float32)          # (K, 3H)
        out = jnp.zeros((Kp, 3 * Hp), jnp.float32)
        for g in range(3):
            out = out.at[:K, g * Hp:g * Hp + H].set(wt[:, g * H:(g + 1) * H])
        return out

    def prep_b(b):                            # b: (3H,) -> (1, 3*Hp)
        out = jnp.zeros((1, 3 * Hp), jnp.float32)
        for g in range(3):
            out = out.at[0, g * Hp:g * Hp + H].set(b[g * H:(g + 1) * H])
        return out

    wih = jnp.stack([prep_w(params["w_ih_f"], I, Ip),
                     prep_w(params["w_ih_b"], I, Ip)])           # (2, Ip, 3Hp)
    whh = jnp.stack([prep_w(params["w_hh_f"], H, Hp),
                     prep_w(params["w_hh_b"], H, Hp)])           # (2, Hp, 3Hp)
    bih = jnp.stack([prep_b(params["b_ih_f"]), prep_b(params["b_ih_b"])])
    bhh = jnp.stack([prep_b(params["b_hh_f"]), prep_b(params["b_hh_b"])])

    if matmul_dtype is not None:
        wih = wih.astype(matmul_dtype)
        whh = whh.astype(matmul_dtype)
    return wih, whh, bih, bhh


# ------------------------------ JAX wrapper ----------------------------------

def bigru_forward(x, params, hidden_size, *, time_chunk=8, matmul_dtype=None):
    """x: (T, B, I) float32; returns (T, B, 2H), same as nn.GRU(bidirectional)."""
    T, B, I = x.shape
    H = hidden_size

    Bp = _round_up(max(B, 8), 8)
    Ip = _round_up(I, 128)
    Hp = _round_up(H, 128)
    Tc = min(time_chunk, T)
    nc = -(-T // Tc)
    Tp = nc * Tc

    # zero-pad input to the kernel layout
    xp = jnp.zeros((Tp, Bp, Ip), jnp.float32).at[:T, :B, :I].set(
        x.astype(jnp.float32))
    if matmul_dtype is not None:
        xp = xp.astype(matmul_dtype)

    wih, whh, bih, bhh = _prepare_params(params, I, H, Ip, Hp, matmul_dtype)

    def blk_idx(d, c):
        # forward visits time chunks left->right, backward right->left
        return (1 - d) * c + d * (nc - 1 - c)

    kernel = functools.partial(_bigru_kernel, seq_len=T, mask_time=(Tp != T))

    out = pl.pallas_call(
        kernel,
        out_shape=jax.ShapeDtypeStruct((Tp, Bp, 2 * Hp), jnp.float32),
        grid_spec=pltpu.PrefetchScalarGridSpec(
            num_scalar_prefetch=0,
            grid=(2, nc),                                  # (direction, chunk)
            in_specs=[
                # x chunk: double-buffered / pipelined across the time grid
                pl.BlockSpec((Tc, Bp, Ip), lambda d, c: (blk_idx(d, c), 0, 0)),
                # per-direction weights/biases stay resident across chunks
                pl.BlockSpec((None, Ip, 3 * Hp), lambda d, c: (d, 0, 0)),
                pl.BlockSpec((None, Hp, 3 * Hp), lambda d, c: (d, 0, 0)),
                pl.BlockSpec((None, 1, 3 * Hp), lambda d, c: (d, 0, 0)),
                pl.BlockSpec((None, 1, 3 * Hp), lambda d, c: (d, 0, 0)),
            ],
            # one lane-dense output: fwd block at lane offset 0, bwd at Hp
            out_specs=pl.BlockSpec((Tc, Bp, Hp),
                                   lambda d, c: (blk_idx(d, c), 0, d)),
            scratch_shapes=[
                pltpu.VMEM((Bp, Hp), jnp.float32),             # carried h
                pltpu.VMEM((Tc, Bp, 3 * Hp), jnp.float32),     # chunk gi
            ],
        ),
        compiler_params=pltpu.CompilerParams(
            dimension_semantics=("parallel", "arbitrary"),
            vmem_limit_bytes=32 * 1024 * 1024,              # safe on v5e/v6e/v7x
        ),
    )(xp, wih, whh, bih, bhh)

    y = out[:T, :B, :]
    if Hp == H:
        return y                                            # already (T,B,2H)
    # strip lane padding from each direction (no-op when H % 128 == 0)
    return jnp.concatenate([y[..., :H], y[..., Hp:Hp + H]], axis=-1)


# ----------------------- deterministic parameter init ------------------------

def init_bigru_params(key, input_size, hidden_size):
    """Mimics PyTorch nn.GRU init: U(-1/sqrt(H), 1/sqrt(H)); torch layout."""
    k = 1.0 / np.sqrt(hidden_size)
    keys = jax.random.split(key, 8)
    H3 = 3 * hidden_size

    def u(kk, shape):
        return jax.random.uniform(kk, shape, jnp.float32, minval=-k, maxval=k)

    return {
        "w_ih_f": u(keys[0], (H3, input_size)),
        "w_hh_f": u(keys[1], (H3, hidden_size)),
        "b_ih_f": u(keys[2], (H3,)),
        "b_hh_f": u(keys[3], (H3,)),
        "w_ih_b": u(keys[4], (H3, input_size)),
        "w_hh_b": u(keys[5], (H3, hidden_size)),
        "b_ih_b": u(keys[6], (H3,)),
        "b_hh_b": u(keys[7], (H3,)),
    }


# --------------------------- pure-JAX reference -------------------------------

def bigru_reference(x, params, hidden_size):
    H = hidden_size

    def direction(xs, w_ih, w_hh, b_ih, b_hh):
        wih, whh = w_ih.T, w_hh.T

        def step(h, x_t):
            gi = x_t @ wih + b_ih
            gh = h @ whh + b_hh
            r = jax.nn.sigmoid(gi[:, 0:H] + gh[:, 0:H])
            z = jax.nn.sigmoid(gi[:, H:2 * H] + gh[:, H:2 * H])
            n = jnp.tanh(gi[:, 2 * H:3 * H] + r * gh[:, 2 * H:3 * H])
            h_new = (1.0 - z) * n + z * h
            return h_new, h_new

        h0 = jnp.zeros((xs.shape[1], H), jnp.float32)
        _, ys = lax.scan(step, h0, xs)
        return ys

    y_f = direction(x, params["w_ih_f"], params["w_hh_f"],
                    params["b_ih_f"], params["b_hh_f"])
    y_b = direction(x[::-1], params["w_ih_b"], params["w_hh_b"],
                    params["b_ih_b"], params["b_hh_b"])[::-1]
    return jnp.concatenate([y_f, y_b], axis=-1)


# ----------------------------------- main -------------------------------------

if __name__ == "__main__":
    T, B, I, H = 8, 2, 16, 32   # seq=8, batch=2, input_size=16, hidden_size=32

    key = jax.random.PRNGKey(0)
    kx, kp = jax.random.split(key)
    x = jax.random.normal(kx, (T, B, I), jnp.float32)
    params = init_bigru_params(kp, I, H)

    # time_chunk=4 -> 2 time chunks: exercises carried hidden state across
    # grid steps and the reversed chunk order of the backward direction.
    out = jax.block_until_ready(bigru_forward(x, params, H, time_chunk=4))
    assert out.shape == (T, B, 2 * H), out.shape
    ref = jax.block_until_ready(bigru_reference(x, params, H))
    np.testing.assert_allclose(np.asarray(out), np.asarray(ref),
                               rtol=1e-5, atol=1e-5)

    # ragged-length check (T not divisible by the chunk): exercises time masking
    T2 = 7
    x2 = jax.random.normal(jax.random.PRNGKey(1), (T2, B, I), jnp.float32)
    out2 = jax.block_until_ready(bigru_forward(x2, params, H, time_chunk=4))
    ref2 = jax.block_until_ready(bigru_reference(x2, params, H))
    np.testing.assert_allclose(np.asarray(out2), np.asarray(ref2),
                               rtol=1e-5, atol=1e-5)

    print("KERNEL_OK")
</pallas_src>

<mosaic_0001>
module attributes {stable_mosaic.version = 11 : i64} {
  func.func @_bigru_kernel(%arg0: i32, %arg1: i32, %arg2: memref<4x8x128xf32, #tpu.memory_space<vmem>>, %arg3: memref<1x128x384xf32, #tpu.memory_space<vmem>>, %arg4: memref<1x128x384xf32, #tpu.memory_space<vmem>>, %arg5: memref<1x1x384xf32, #tpu.memory_space<vmem>>, %arg6: memref<1x1x384xf32, #tpu.memory_space<vmem>>, %arg7: memref<4x8x128xf32, #tpu.memory_space<vmem>>, %arg8: memref<8x128xf32, #tpu.memory_space<vmem>>, %arg9: memref<4x8x384xf32, #tpu.memory_space<vmem>>) attributes {dimension_semantics = [#tpu.dimension_semantics<parallel>, #tpu.dimension_semantics<arbitrary>], iteration_bounds = array<i64: 2, 2>, scalar_prefetch = 0 : i64, scratch_operands = 2 : i64, tpu.core_type = #tpu.core_type<tc>, window_params = [{transform_indices = @transform_0, window_bounds = array<i64: 4, 8, 128>}, {transform_indices = @transform_1, window_bounds = array<i64: 1, 128, 384>}, {transform_indices = @transform_2, window_bounds = array<i64: 1, 128, 384>}, {transform_indices = @transform_3, window_bounds = array<i64: 1, 1, 384>}, {transform_indices = @transform_4, window_bounds = array<i64: 1, 1, 384>}, {transform_indices = @transform_5, window_bounds = array<i64: 4, 8, 128>}]} {
    %c0 = arith.constant 0 : index
    %c0_0 = arith.constant 0 : index
    %c0_1 = arith.constant 0 : index
    %0 = vector.load %arg2[%c0, %c0_0, %c0_1] : memref<4x8x128xf32, #tpu.memory_space<vmem>>, vector<4x8x128xf32>
    %1 = vector.shape_cast %0 : vector<4x8x128xf32> to vector<32x128xf32>
    %c0_2 = arith.constant 0 : index
    %c0_3 = arith.constant 0 : index
    %c0_4 = arith.constant 0 : index
    %2 = vector.load %arg3[%c0_2, %c0_3, %c0_4] : memref<1x128x384xf32, #tpu.memory_space<vmem>>, vector<1x128x384xf32>
    %3 = vector.shape_cast %2 : vector<1x128x384xf32> to vector<128x384xf32>
    %cst = arith.constant dense<0.000000e+00> : vector<32x384xf32>
    %4 = tpu.matmul %1, %3, %cst {dimension_numbers = #tpu.dot_dimension_numbers<[1], [0], [0], [1], [0, 0, 1, 1], [], []>} : vector<32x128xf32>, vector<128x384xf32>, vector<32x384xf32> -> vector<32x384xf32>
    %c0_5 = arith.constant 0 : index
    %c0_6 = arith.constant 0 : index
    %c0_7 = arith.constant 0 : index
    %5 = vector.load %arg5[%c0_5, %c0_6, %c0_7] : memref<1x1x384xf32, #tpu.memory_space<vmem>>, vector<1x1x384xf32>
    %6 = vector.shape_cast %5 : vector<1x1x384xf32> to vector<1x384xf32>
    %7 = vector.broadcast %6 : vector<1x384xf32> to vector<32x384xf32>
    %8 = arith.addf %4, %7 : vector<32x384xf32>
    %9 = vector.shape_cast %8 : vector<32x384xf32> to vector<4x8x384xf32>
    %c0_8 = arith.constant 0 : index
    %c0_9 = arith.constant 0 : index
    %c0_10 = arith.constant 0 : index
    %10 = vector.load %arg9[%c0_8, %c0_9, %c0_10] : memref<4x8x384xf32, #tpu.memory_space<vmem>>, vector<4x8x384xf32>
    tpu.vector_store %arg9[%c0_8, %c0_9, %c0_10], %9 {strides = array<i32>} : memref<4x8x384xf32, #tpu.memory_space<vmem>>, vector<4x8x384xf32>,
    %c0_11 = arith.constant 0 : index
    %c0_12 = arith.constant 0 : index
    %c0_13 = arith.constant 0 : index
    %11 = vector.load %arg4[%c0_11, %c0_12, %c0_13] : memref<1x128x384xf32, #tpu.memory_space<vmem>>, vector<1x128x384xf32>
    %12 = vector.shape_cast %11 : vector<1x128x384xf32> to vector<128x384xf32>
    %c0_14 = arith.constant 0 : index
    %c0_15 = arith.constant 0 : index
    %c0_16 = arith.constant 0 : index
    %13 = vector.load %arg6[%c0_14, %c0_15, %c0_16] : memref<1x1x384xf32, #tpu.memory_space<vmem>>, vector<1x1x384xf32>
    %14 = vector.shape_cast %13 : vector<1x1x384xf32> to vector<1x384xf32>
    %15 = vector.shape_cast %14 : vector<1x384xf32> to vector<1x384xf32>
    %16 = vector.broadcast %15 : vector<1x384xf32> to vector<8x384xf32>
    %c0_i32 = arith.constant 0 : i32
    %17 = arith.cmpi eq, %arg1, %c0_i32 : i32
    %18 = arith.extui %17 : i1 to i32
    %c0_i32_17 = arith.constant 0 : i32
    %19 = arith.cmpi ne, %18, %c0_i32_17 : i32
    scf.if %19 {
      %cst_21 = arith.constant 0.000000e+00 : f32
      %26 = vector.broadcast %cst_21 : f32 to vector<8x128xf32>
      %c0_22 = arith.constant 0 : index
      %c0_23 = arith.constant 0 : index
      %27 = vector.load %arg8[%c0_22, %c0_23] : memref<8x128xf32, #tpu.memory_space<vmem>>, vector<8x128xf32>
      tpu.vector_store %arg8[%c0_22, %c0_23], %26 {strides = array<i32>} : memref<8x128xf32, #tpu.memory_space<vmem>>, vector<8x128xf32>,
    } else {
    }
    %c0_i32_18 = arith.constant 0 : i32
    %20 = arith.cmpi eq, %arg0, %c0_i32_18 : i32
    %21 = arith.extui %20 : i1 to i32
    %c0_i32_19 = arith.constant 0 : i32
    %22 = arith.cmpi ne, %21, %c0_i32_19 : i32
    scf.if %22 {
      %c0_21 = arith.constant 0 : index
      %c0_22 = arith.constant 0 : index
      %26 = vector.load %arg8[%c0_21, %c0_22] : memref<8x128xf32, #tpu.memory_space<vmem>>, vector<8x128xf32>
      %c0_23 = arith.constant 0 : index
      %c0_24 = arith.constant 0 : index
      %c0_25 = arith.constant 0 : index
      %27 = vector.load %arg9[%c0_23, %c0_24, %c0_25] : memref<4x8x384xf32, #tpu.memory_space<vmem>>, vector<1x8x384xf32>
      %28 = vector.shape_cast %27 : vector<1x8x384xf32> to vector<8x384xf32>
      %cst_26 = arith.constant dense<0.000000e+00> : vector<8x384xf32>
      %29 = tpu.matmul %26, %12, %cst_26 {dimension_numbers = #tpu.dot_dimension_numbers<[1], [0], [0], [1], [0, 0, 1, 1], [], []>} : vector<8x128xf32>, vector<128x384xf32>, vector<8x384xf32> -> vector<8x384xf32>
      %30 = arith.addf %29, %16 : vector<8x384xf32>
      %31 = vector.extract_strided_slice %28 {offsets = [0, 0], sizes = [8, 128], strides = [1, 1]} : vector<8x384xf32> to vector<8x128xf32>
      %32 = vector.extract_strided_slice %30 {offsets = [0, 0], sizes = [8, 128], strides = [1, 1]} : vector<8x384xf32> to vector<8x128xf32>
      %33 = arith.addf %31, %32 : vector<8x128xf32>
      %34 = arith.negf %33 : vector<8x128xf32>
      %35 = math.exp %34 : vector<8x128xf32>
      %cst_27 = arith.constant 1.000000e+00 : f32
      %36 = vector.broadcast %cst_27 : f32 to vector<8x128xf32>
      %37 = arith.addf %36, %35 : vector<8x128xf32>
      %38 = arith.divf %36, %37 : vector<8x128xf32>
      %39 = vector.extract_strided_slice %28 {offsets = [0, 128], sizes = [8, 128], strides = [1, 1]} : vector<8x384xf32> to vector<8x128xf32>
      %40 = vector.extract_strided_slice %30 {offsets = [0, 128], sizes = [8, 128], strides = [1, 1]} : vector<8x384xf32> to vector<8x128xf32>
      %41 = arith.addf %39, %40 : vector<8x128xf32>
      %42 = arith.negf %41 : vector<8x128xf32>
      %43 = math.exp %42 : vector<8x128xf32>
      %cst_28 = arith.constant 1.000000e+00 : f32
      %44 = vector.broadcast %cst_28 : f32 to vector<8x128xf32>
      %45 = arith.addf %44, %43 : vector<8x128xf32>
      %46 = arith.divf %44, %45 : vector<8x128xf32>
      %47 = vector.extract_strided_slice %28 {offsets = [0, 256], sizes = [8, 128], strides = [1, 1]} : vector<8x384xf32> to vector<8x128xf32>
      %48 = vector.extract_strided_slice %30 {offsets = [0, 256], sizes = [8, 128], strides = [1, 1]} : vector<8x384xf32> to vector<8x128xf32>
      %49 = arith.mulf %38, %48 : vector<8x128xf32>
      %50 = arith.addf %47, %49 : vector<8x128xf32>
      %51 = math.tanh %50 : vector<8x128xf32>
      %52 = arith.subf %26, %51 : vector<8x128xf32>
      %53 = arith.mulf %46, %52 : vector<8x128xf32>
      %54 = arith.addf %51, %53 : vector<8x128xf32>
      %c0_29 = arith.constant 0 : index
      %c0_30 = arith.constant 0 : index
      %c0_31 = arith.constant 0 : index
      %55 = vector.load %arg7[%c0_29, %c0_30, %c0_31] : memref<4x8x128xf32, #tpu.memory_space<vmem>>, vector<1x8x128xf32>
      %56 = vector.shape_cast %55 : vector<1x8x128xf32> to vector<8x128xf32>
      %57 = vector.shape_cast %54 : vector<8x128xf32> to vector<1x8x128xf32>
      tpu.vector_store %arg7[%c0_29, %c0_30, %c0_31], %57 {strides = array<i32>} : memref<4x8x128xf32, #tpu.memory_space<vmem>>, vector<1x8x128xf32>,
      %c1 = arith.constant 1 : index
      %c0_32 = arith.constant 0 : index
      %c0_33 = arith.constant 0 : index
      %58 = vector.load %arg9[%c1, %c0_32, %c0_33] : memref<4x8x384xf32, #tpu.memory_space<vmem>>, vector<1x8x384xf32>
      %59 = vector.shape_cast %58 : vector<1x8x384xf32> to vector<8x384xf32>
      %cst_34 = arith.constant dense<0.000000e+00> : vector<8x384xf32>
      %60 = tpu.matmul %54, %12, %cst_34 {dimension_numbers = #tpu.dot_dimension_numbers<[1], [0], [0], [1], [0, 0, 1, 1], [], []>} : vector<8x128xf32>, vector<128x384xf32>, vector<8x384xf32> -> vector<8x384xf32>
      %61 = arith.addf %60, %16 : vector<8x384xf32>
      %62 = vector.extract_strided_slice %59 {offsets = [0, 0], sizes = [8, 128], strides = [1, 1]} : vector<8x384xf32> to vector<8x128xf32>
      %63 = vector.extract_strided_slice %61 {offsets = [0, 0], sizes = [8, 128], strides = [1, 1]} : vector<8x384xf32> to vector<8x128xf32>
      %64 = arith.addf %62, %63 : vector<8x128xf32>
      %65 = arith.negf %64 : vector<8x128xf32>
      %66 = math.exp %65 : vector<8x128xf32>
      %cst_35 = arith.constant 1.000000e+00 : f32
      %67 = vector.broadcast %cst_35 : f32 to vector<8x128xf32>
      %68 = arith.addf %67, %66 : vector<8x128xf32>
      %69 = arith.divf %67, %68 : vector<8x128xf32>
      %70 = vector.extract_strided_slice %59 {offsets = [0, 128], sizes = [8, 128], strides = [1, 1]} : vector<8x384xf32> to vector<8x128xf32>
      %71 = vector.extract_strided_slice %61 {offsets = [0, 128], sizes = [8, 128], strides = [1, 1]} : vector<8x384xf32> to vector<8x128xf32>
      %72 = arith.addf %70, %71 : vector<8x128xf32>
      %73 = arith.negf %72 : vector<8x128xf32>
      %74 = math.exp %73 : vector<8x128xf32>
      %cst_36 = arith.constant 1.000000e+00 : f32
      %75 = vector.broadcast %cst_36 : f32 to vector<8x128xf32>
      %76 = arith.addf %75, %74 : vector<8x128xf32>
      %77 = arith.divf %75, %76 : vector<8x128xf32>
      %78 = vector.extract_strided_slice %59 {offsets = [0, 256], sizes = [8, 128], strides = [1, 1]} : vector<8x384xf32> to vector<8x128xf32>
      %79 = vector.extract_strided_slice %61 {offsets = [0, 256], sizes = [8, 128], strides = [1, 1]} : vector<8x384xf32> to vector<8x128xf32>
      %80 = arith.mulf %69, %79 : vector<8x128xf32>
      %81 = arith.addf %78, %80 : vector<8x128xf32>
      %82 = math.tanh %81 : vector<8x128xf32>
      %83 = arith.subf %54, %82 : vector<8x128xf32>
      %84 = arith.mulf %77, %83 : vector<8x128xf32>
      %85 = arith.addf %82, %84 : vector<8x128xf32>
      %c1_37 = arith.constant 1 : index
      %c0_38 = arith.constant 0 : index
      %c0_39 = arith.constant 0 : index
      %86 = vector.load %arg7[%c1_37, %c0_38, %c0_39] : memref<4x8x128xf32, #tpu.memory_space<vmem>>, vector<1x8x128xf32>
      %87 = vector.shape_cast %86 : vector<1x8x128xf32> to vector<8x128xf32>
      %88 = vector.shape_cast %85 : vector<8x128xf32> to vector<1x8x128xf32>
      tpu.vector_store %arg7[%c1_37, %c0_38, %c0_39], %88 {strides = array<i32>} : memref<4x8x128xf32, #tpu.memory_space<vmem>>, vector<1x8x128xf32>,
      %c2 = arith.constant 2 : index
      %c0_40 = arith.constant 0 : index
      %c0_41 = arith.constant 0 : index
      %89 = vector.load %arg9[%c2, %c0_40, %c0_41] : memref<4x8x384xf32, #tpu.memory_space<vmem>>, vector<1x8x384xf32>
      %90 = vector.shape_cast %89 : vector<1x8x384xf32> to vector<8x384xf32>
      %cst_42 = arith.constant dense<0.000000e+00> : vector<8x384xf32>
      %91 = tpu.matmul %85, %12, %cst_42 {dimension_numbers = #tpu.dot_dimension_numbers<[1], [0], [0], [1], [0, 0, 1, 1], [], []>} : vector<8x128xf32>, vector<128x384xf32>, vector<8x384xf32> -> vector<8x384xf32>
      %92 = arith.addf %91, %16 : vector<8x384xf32>
      %93 = vector.extract_strided_slice %90 {offsets = [0, 0], sizes = [8, 128], strides = [1, 1]} : vector<8x384xf32> to vector<8x128xf32>
      %94 = vector.extract_strided_slice %92 {offsets = [0, 0], sizes = [8, 128], strides = [1, 1]} : vector<8x384xf32> to vector<8x128xf32>
      %95 = arith.addf %93, %94 : vector<8x128xf32>
      %96 = arith.negf %95 : vector<8x128xf32>
      %97 = math.exp %96 : vector<8x128xf32>
      %cst_43 = arith.constant 1.000000e+00 : f32
      %98 = vector.broadcast %cst_43 : f32 to vector<8x128xf32>
      %99 = arith.addf %98, %97 : vector<8x128xf32>
      %100 = arith.divf %98, %99 : vector<8x128xf32>
      %101 = vector.extract_strided_slice %90 {offsets = [0, 128], sizes = [8, 128], strides = [1, 1]} : vector<8x384xf32> to vector<8x128xf32>
      %102 = vector.extract_strided_slice %92 {offsets = [0, 128], sizes = [8, 128], strides = [1, 1]} : vector<8x384xf32> to vector<8x128xf32>
      %103 = arith.addf %101, %102 : vector<8x128xf32>
      %104 = arith.negf %103 : vector<8x128xf32>
      %105 = math.exp %104 : vector<8x128xf32>
      %cst_44 = arith.constant 1.000000e+00 : f32
      %106 = vector.broadcast %cst_44 : f32 to vector<8x128xf32>
      %107 = arith.addf %106, %105 : vector<8x128xf32>
      %108 = arith.divf %106, %107 : vector<8x128xf32>
      %109 = vector.extract_strided_slice %90 {offsets = [0, 256], sizes = [8, 128], strides = [1, 1]} : vector<8x384xf32> to vector<8x128xf32>
      %110 = vector.extract_strided_slice %92 {offsets = [0, 256], sizes = [8, 128], strides = [1, 1]} : vector<8x384xf32> to vector<8x128xf32>
      %111 = arith.mulf %100, %110 : vector<8x128xf32>
      %112 = arith.addf %109, %111 : vector<8x128xf32>
      %113 = math.tanh %112 : vector<8x128xf32>
      %114 = arith.subf %85, %113 : vector<8x128xf32>
      %115 = arith.mulf %108, %114 : vector<8x128xf32>
      %116 = arith.addf %113, %115 : vector<8x128xf32>
      %c2_45 = arith.constant 2 : index
      %c0_46 = arith.constant 0 : index
      %c0_47 = arith.constant 0 : index
      %117 = vector.load %arg7[%c2_45, %c0_46, %c0_47] : memref<4x8x128xf32, #tpu.memory_space<vmem>>, vector<1x8x128xf32>
      %118 = vector.shape_cast %117 : vector<1x8x128xf32> to vector<8x128xf32>
      %119 = vector.shape_cast %116 : vector<8x128xf32> to vector<1x8x128xf32>
      tpu.vector_store %arg7[%c2_45, %c0_46, %c0_47], %119 {strides = array<i32>} : memref<4x8x128xf32, #tpu.memory_space<vmem>>, vector<1x8x128xf32>,
      %c3 = arith.constant 3 : index
      %c0_48 = arith.constant 0 : index
      %c0_49 = arith.constant 0 : index
      %120 = vector.load %arg9[%c3, %c0_48, %c0_49] : memref<4x8x384xf32, #tpu.memory_space<vmem>>, vector<1x8x384xf32>
      %121 = vector.shape_cast %120 : vector<1x8x384xf32> to vector<8x384xf32>
      %cst_50 = arith.constant dense<0.000000e+00> : vector<8x384xf32>
      %122 = tpu.matmul %116, %12, %cst_50 {dimension_numbers = #tpu.dot_dimension_numbers<[1], [0], [0], [1], [0, 0, 1, 1], [], []>} : vector<8x128xf32>, vector<128x384xf32>, vector<8x384xf32> -> vector<8x384xf32>
      %123 = arith.addf %122, %16 : vector<8x384xf32>
      %124 = vector.extract_strided_slice %121 {offsets = [0, 0], sizes = [8, 128], strides = [1, 1]} : vector<8x384xf32> to vector<8x128xf32>
      %125 = vector.extract_strided_slice %123 {offsets = [0, 0], sizes = [8, 128], strides = [1, 1]} : vector<8x384xf32> to vector<8x128xf32>
      %126 = arith.addf %124, %125 : vector<8x128xf32>
      %127 = arith.negf %126 : vector<8x128xf32>
      %128 = math.exp %127 : vector<8x128xf32>
      %cst_51 = arith.constant 1.000000e+00 : f32
      %129 = vector.broadcast %cst_51 : f32 to vector<8x128xf32>
      %130 = arith.addf %129, %128 : vector<8x128xf32>
      %131 = arith.divf %129, %130 : vector<8x128xf32>
      %132 = vector.extract_strided_slice %121 {offsets = [0, 128], sizes = [8, 128], strides = [1, 1]} : vector<8x384xf32> to vector<8x128xf32>
      %133 = vector.extract_strided_slice %123 {offsets = [0, 128], sizes = [8, 128], strides = [1, 1]} : vector<8x384xf32> to vector<8x128xf32>
      %134 = arith.addf %132, %133 : vector<8x128xf32>
      %135 = arith.negf %134 : vector<8x128xf32>
      %136 = math.exp %135 : vector<8x128xf32>
      %cst_52 = arith.constant 1.000000e+00 : f32
      %137 = vector.broadcast %cst_52 : f32 to vector<8x128xf32>
      %138 = arith.addf %137, %136 : vector<8x128xf32>
      %139 = arith.divf %137, %138 : vector<8x128xf32>
      %140 = vector.extract_strided_slice %121 {offsets = [0, 256], sizes = [8, 128], strides = [1, 1]} : vector<8x384xf32> to vector<8x128xf32>
      %141 = vector.extract_strided_slice %123 {offsets = [0, 256], sizes = [8, 128], strides = [1, 1]} : vector<8x384xf32> to vector<8x128xf32>
      %142 = arith.mulf %131, %141 : vector<8x128xf32>
      %143 = arith.addf %140, %142 : vector<8x128xf32>
      %144 = math.tanh %143 : vector<8x128xf32>
      %145 = arith.subf %116, %144 : vector<8x128xf32>
      %146 = arith.mulf %139, %145 : vector<8x128xf32>
      %147 = arith.addf %144, %146 : vector<8x128xf32>
      %c3_53 = arith.constant 3 : index
      %c0_54 = arith.constant 0 : index
      %c0_55 = arith.constant 0 : index
      %148 = vector.load %arg7[%c3_53, %c0_54, %c0_55] : memref<4x8x128xf32, #tpu.memory_space<vmem>>, vector<1x8x128xf32>
      %149 = vector.shape_cast %148 : vector<1x8x128xf32> to vector<8x128xf32>
      %150 = vector.shape_cast %147 : vector<8x128xf32> to vector<1x8x128xf32>
      tpu.vector_store %arg7[%c3_53, %c0_54, %c0_55], %150 {strides = array<i32>} : memref<4x8x128xf32, #tpu.memory_space<vmem>>, vector<1x8x128xf32>,
      %c0_56 = arith.constant 0 : index
      %c0_57 = arith.constant 0 : index
      %151 = vector.load %arg8[%c0_56, %c0_57] : memref<8x128xf32, #tpu.memory_space<vmem>>, vector<8x128xf32>
      tpu.vector_store %arg8[%c0_56, %c0_57], %147 {strides = array<i32>} : memref<8x128xf32, #tpu.memory_space<vmem>>, vector<8x128xf32>,
    } else {
    }
    %c1_i32 = arith.constant 1 : i32
    %23 = arith.cmpi eq, %arg0, %c1_i32 : i32
    %24 = arith.extui %23 : i1 to i32
    %c0_i32_20 = arith.constant 0 : i32
    %25 = arith.cmpi ne, %24, %c0_i32_20 : i32
    scf.if %25 {
      %c0_21 = arith.constant 0 : index
      %c0_22 = arith.constant 0 : index
      %26 = vector.load %arg8[%c0_21, %c0_22] : memref<8x128xf32, #tpu.memory_space<vmem>>, vector<8x128xf32>
      %c3 = arith.constant 3 : index
      %c0_23 = arith.constant 0 : index
      %c0_24 = arith.constant 0 : index
      %27 = vector.load %arg9[%c3, %c0_23, %c0_24] : memref<4x8x384xf32, #tpu.memory_space<vmem>>, vector<1x8x384xf32>
      %28 = vector.shape_cast %27 : vector<1x8x384xf32> to vector<8x384xf32>
      %cst_25 = arith.constant dense<0.000000e+00> : vector<8x384xf32>
      %29 = tpu.matmul %26, %12, %cst_25 {dimension_numbers = #tpu.dot_dimension_numbers<[1], [0], [0], [1], [0, 0, 1, 1], [], []>} : vector<8x128xf32>, vector<128x384xf32>, vector<8x384xf32> -> vector<8x384xf32>
      %30 = arith.addf %29, %16 : vector<8x384xf32>
      %31 = vector.extract_strided_slice %28 {offsets = [0, 0], sizes = [8, 128], strides = [1, 1]} : vector<8x384xf32> to vector<8x128xf32>
      %32 = vector.extract_strided_slice %30 {offsets = [0, 0], sizes = [8, 128], strides = [1, 1]} : vector<8x384xf32> to vector<8x128xf32>
      %33 = arith.addf %31, %32 : vector<8x128xf32>
      %34 = arith.negf %33 : vector<8x128xf32>
      %35 = math.exp %34 : vector<8x128xf32>
      %cst_26 = arith.constant 1.000000e+00 : f32
      %36 = vector.broadcast %cst_26 : f32 to vector<8x128xf32>
      %37 = arith.addf %36, %35 : vector<8x128xf32>
      %38 = arith.divf %36, %37 : vector<8x128xf32>
      %39 = vector.extract_strided_slice %28 {offsets = [0, 128], sizes = [8, 128], strides = [1, 1]} : vector<8x384xf32> to vector<8x128xf32>
      %40 = vector.extract_strided_slice %30 {offsets = [0, 128], sizes = [8, 128], strides = [1, 1]} : vector<8x384xf32> to vector<8x128xf32>
      %41 = arith.addf %39, %40 : vector<8x128xf32>
      %42 = arith.negf %41 : vector<8x128xf32>
      %43 = math.exp %42 : vector<8x128xf32>
      %cst_27 = arith.constant 1.000000e+00 : f32
      %44 = vector.broadcast %cst_27 : f32 to vector<8x128xf32>
      %45 = arith.addf %44, %43 : vector<8x128xf32>
      %46 = arith.divf %44, %45 : vector<8x128xf32>
      %47 = vector.extract_strided_slice %28 {offsets = [0, 256], sizes = [8, 128], strides = [1, 1]} : vector<8x384xf32> to vector<8x128xf32>
      %48 = vector.extract_strided_slice %30 {offsets = [0, 256], sizes = [8, 128], strides = [1, 1]} : vector<8x384xf32> to vector<8x128xf32>
      %49 = arith.mulf %38, %48 : vector<8x128xf32>
      %50 = arith.addf %47, %49 : vector<8x128xf32>
      %51 = math.tanh %50 : vector<8x128xf32>
      %52 = arith.subf %26, %51 : vector<8x128xf32>
      %53 = arith.mulf %46, %52 : vector<8x128xf32>
      %54 = arith.addf %51, %53 : vector<8x128xf32>
      %c3_28 = arith.constant 3 : index
      %c0_29 = arith.constant 0 : index
      %c0_30 = arith.constant 0 : index
      %55 = vector.load %arg7[%c3_28, %c0_29, %c0_30] : memref<4x8x128xf32, #tpu.memory_space<vmem>>, vector<1x8x128xf32>
      %56 = vector.shape_cast %55 : vector<1x8x128xf32> to vector<8x128xf32>
      %57 = vector.shape_cast %54 : vector<8x128xf32> to vector<1x8x128xf32>
      tpu.vector_store %arg7[%c3_28, %c0_29, %c0_30], %57 {strides = array<i32>} : memref<4x8x128xf32, #tpu.memory_space<vmem>>, vector<1x8x128xf32>,
      %c2 = arith.constant 2 : index
      %c0_31 = arith.constant 0 : index
      %c0_32 = arith.constant 0 : index
      %58 = vector.load %arg9[%c2, %c0_31, %c0_32] : memref<4x8x384xf32, #tpu.memory_space<vmem>>, vector<1x8x384xf32>
      %59 = vector.shape_cast %58 : vector<1x8x384xf32> to vector<8x384xf32>
      %cst_33 = arith.constant dense<0.000000e+00> : vector<8x384xf32>
      %60 = tpu.matmul %54, %12, %cst_33 {dimension_numbers = #tpu.dot_dimension_numbers<[1], [0], [0], [1], [0, 0, 1, 1], [], []>} : vector<8x128xf32>, vector<128x384xf32>, vector<8x384xf32> -> vector<8x384xf32>
      %61 = arith.addf %60, %16 : vector<8x384xf32>
      %62 = vector.extract_strided_slice %59 {offsets = [0, 0], sizes = [8, 128], strides = [1, 1]} : vector<8x384xf32> to vector<8x128xf32>
      %63 = vector.extract_strided_slice %61 {offsets = [0, 0], sizes = [8, 128], strides = [1, 1]} : vector<8x384xf32> to vector<8x128xf32>
      %64 = arith.addf %62, %63 : vector<8x128xf32>
      %65 = arith.negf %64 : vector<8x128xf32>
      %66 = math.exp %65 : vector<8x128xf32>
      %cst_34 = arith.constant 1.000000e+00 : f32
      %67 = vector.broadcast %cst_34 : f32 to vector<8x128xf32>
      %68 = arith.addf %67, %66 : vector<8x128xf32>
      %69 = arith.divf %67, %68 : vector<8x128xf32>
      %70 = vector.extract_strided_slice %59 {offsets = [0, 128], sizes = [8, 128], strides = [1, 1]} : vector<8x384xf32> to vector<8x128xf32>
      %71 = vector.extract_strided_slice %61 {offsets = [0, 128], sizes = [8, 128], strides = [1, 1]} : vector<8x384xf32> to vector<8x128xf32>
      %72 = arith.addf %70, %71 : vector<8x128xf32>
      %73 = arith.negf %72 : vector<8x128xf32>
      %74 = math.exp %73 : vector<8x128xf32>
      %cst_35 = arith.constant 1.000000e+00 : f32
      %75 = vector.broadcast %cst_35 : f32 to vector<8x128xf32>
      %76 = arith.addf %75, %74 : vector<8x128xf32>
      %77 = arith.divf %75, %76 : vector<8x128xf32>
      %78 = vector.extract_strided_slice %59 {offsets = [0, 256], sizes = [8, 128], strides = [1, 1]} : vector<8x384xf32> to vector<8x128xf32>
      %79 = vector.extract_strided_slice %61 {offsets = [0, 256], sizes = [8, 128], strides = [1, 1]} : vector<8x384xf32> to vector<8x128xf32>
      %80 = arith.mulf %69, %79 : vector<8x128xf32>
      %81 = arith.addf %78, %80 : vector<8x128xf32>
      %82 = math.tanh %81 : vector<8x128xf32>
      %83 = arith.subf %54, %82 : vector<8x128xf32>
      %84 = arith.mulf %77, %83 : vector<8x128xf32>
      %85 = arith.addf %82, %84 : vector<8x128xf32>
      %c2_36 = arith.constant 2 : index
      %c0_37 = arith.constant 0 : index
      %c0_38 = arith.constant 0 : index
      %86 = vector.load %arg7[%c2_36, %c0_37, %c0_38] : memref<4x8x128xf32, #tpu.memory_space<vmem>>, vector<1x8x128xf32>
      %87 = vector.shape_cast %86 : vector<1x8x128xf32> to vector<8x128xf32>
      %88 = vector.shape_cast %85 : vector<8x128xf32> to vector<1x8x128xf32>
      tpu.vector_store %arg7[%c2_36, %c0_37, %c0_38], %88 {strides = array<i32>} : memref<4x8x128xf32, #tpu.memory_space<vmem>>, vector<1x8x128xf32>,
      %c1 = arith.constant 1 : index
      %c0_39 = arith.constant 0 : index
      %c0_40 = arith.constant 0 : index
      %89 = vector.load %arg9[%c1, %c0_39, %c0_40] : memref<4x8x384xf32, #tpu.memory_space<vmem>>, vector<1x8x384xf32>
      %90 = vector.shape_cast %89 : vector<1x8x384xf32> to vector<8x384xf32>
      %cst_41 = arith.constant dense<0.000000e+00> : vector<8x384xf32>
      %91 = tpu.matmul %85, %12, %cst_41 {dimension_numbers = #tpu.dot_dimension_numbers<[1], [0], [0], [1], [0, 0, 1, 1], [], []>} : vector<8x128xf32>, vector<128x384xf32>, vector<8x384xf32> -> vector<8x384xf32>
      %92 = arith.addf %91, %16 : vector<8x384xf32>
      %93 = vector.extract_strided_slice %90 {offsets = [0, 0], sizes = [8, 128], strides = [1, 1]} : vector<8x384xf32> to vector<8x128xf32>
      %94 = vector.extract_strided_slice %92 {offsets = [0, 0], sizes = [8, 128], strides = [1, 1]} : vector<8x384xf32> to vector<8x128xf32>
      %95 = arith.addf %93, %94 : vector<8x128xf32>
      %96 = arith.negf %95 : vector<8x128xf32>
      %97 = math.exp %96 : vector<8x128xf32>
      %cst_42 = arith.constant 1.000000e+00 : f32
      %98 = vector.broadcast %cst_42 : f32 to vector<8x128xf32>
      %99 = arith.addf %98, %97 : vector<8x128xf32>
      %100 = arith.divf %98, %99 : vector<8x128xf32>
      %101 = vector.extract_strided_slice %90 {offsets = [0, 128], sizes = [8, 128], strides = [1, 1]} : vector<8x384xf32> to vector<8x128xf32>
      %102 = vector.extract_strided_slice %92 {offsets = [0, 128], sizes = [8, 128], strides = [1, 1]} : vector<8x384xf32> to vector<8x128xf32>
      %103 = arith.addf %101, %102 : vector<8x128xf32>
      %104 = arith.negf %103 : vector<8x128xf32>
      %105 = math.exp %104 : vector<8x128xf32>
      %cst_43 = arith.constant 1.000000e+00 : f32
      %106 = vector.broadcast %cst_43 : f32 to vector<8x128xf32>
      %107 = arith.addf %106, %105 : vector<8x128xf32>
      %108 = arith.divf %106, %107 : vector<8x128xf32>
      %109 = vector.extract_strided_slice %90 {offsets = [0, 256], sizes = [8, 128], strides = [1, 1]} : vector<8x384xf32> to vector<8x128xf32>
      %110 = vector.extract_strided_slice %92 {offsets = [0, 256], sizes = [8, 128], strides = [1, 1]} : vector<8x384xf32> to vector<8x128xf32>
      %111 = arith.mulf %100, %110 : vector<8x128xf32>
      %112 = arith.addf %109, %111 : vector<8x128xf32>
      %113 = math.tanh %112 : vector<8x128xf32>
      %114 = arith.subf %85, %113 : vector<8x128xf32>
      %115 = arith.mulf %108, %114 : vector<8x128xf32>
      %116 = arith.addf %113, %115 : vector<8x128xf32>
      %c1_44 = arith.constant 1 : index
      %c0_45 = arith.constant 0 : index
      %c0_46 = arith.constant 0 : index
      %117 = vector.load %arg7[%c1_44, %c0_45, %c0_46] : memref<4x8x128xf32, #tpu.memory_space<vmem>>, vector<1x8x128xf32>
      %118 = vector.shape_cast %117 : vector<1x8x128xf32> to vector<8x128xf32>
      %119 = vector.shape_cast %116 : vector<8x128xf32> to vector<1x8x128xf32>
      tpu.vector_store %arg7[%c1_44, %c0_45, %c0_46], %119 {strides = array<i32>} : memref<4x8x128xf32, #tpu.memory_space<vmem>>, vector<1x8x128xf32>,
      %c0_47 = arith.constant 0 : index
      %c0_48 = arith.constant 0 : index
      %c0_49 = arith.constant 0 : index
      %120 = vector.load %arg9[%c0_47, %c0_48, %c0_49] : memref<4x8x384xf32, #tpu.memory_space<vmem>>, vector<1x8x384xf32>
      %121 = vector.shape_cast %120 : vector<1x8x384xf32> to vector<8x384xf32>
      %cst_50 = arith.constant dense<0.000000e+00> : vector<8x384xf32>
      %122 = tpu.matmul %116, %12, %cst_50 {dimension_numbers = #tpu.dot_dimension_numbers<[1], [0], [0], [1], [0, 0, 1, 1], [], []>} : vector<8x128xf32>, vector<128x384xf32>, vector<8x384xf32> -> vector<8x384xf32>
      %123 = arith.addf %122, %16 : vector<8x384xf32>
      %124 = vector.extract_strided_slice %121 {offsets = [0, 0], sizes = [8, 128], strides = [1, 1]} : vector<8x384xf32> to vector<8x128xf32>
      %125 = vector.extract_strided_slice %123 {offsets = [0, 0], sizes = [8, 128], strides = [1, 1]} : vector<8x384xf32> to vector<8x128xf32>
      %126 = arith.addf %124, %125 : vector<8x128xf32>
      %127 = arith.negf %126 : vector<8x128xf32>
      %128 = math.exp %127 : vector<8x128xf32>
      %cst_51 = arith.constant 1.000000e+00 : f32
      %129 = vector.broadcast %cst_51 : f32 to vector<8x128xf32>
      %130 = arith.addf %129, %128 : vector<8x128xf32>
      %131 = arith.divf %129, %130 : vector<8x128xf32>
      %132 = vector.extract_strided_slice %121 {offsets = [0, 128], sizes = [8, 128], strides = [1, 1]} : vector<8x384xf32> to vector<8x128xf32>
      %133 = vector.extract_strided_slice %123 {offsets = [0, 128], sizes = [8, 128], strides = [1, 1]} : vector<8x384xf32> to vector<8x128xf32>
      %134 = arith.addf %132, %133 : vector<8x128xf32>
      %135 = arith.negf %134 : vector<8x128xf32>
      %136 = math.exp %135 : vector<8x128xf32>
      %cst_52 = arith.constant 1.000000e+00 : f32
      %137 = vector.broadcast %cst_52 : f32 to vector<8x128xf32>
      %138 = arith.addf %137, %136 : vector<8x128xf32>
      %139 = arith.divf %137, %138 : vector<8x128xf32>
      %140 = vector.extract_strided_slice %121 {offsets = [0, 256], sizes = [8, 128], strides = [1, 1]} : vector<8x384xf32> to vector<8x128xf32>
      %141 = vector.extract_strided_slice %123 {offsets = [0, 256], sizes = [8, 128], strides = [1, 1]} : vector<8x384xf32> to vector<8x128xf32>
      %142 = arith.mulf %131, %141 : vector<8x128xf32>
      %143 = arith.addf %140, %142 : vector<8x128xf32>
      %144 = math.tanh %143 : vector<8x128xf32>
      %145 = arith.subf %116, %144 : vector<8x128xf32>
      %146 = arith.mulf %139, %145 : vector<8x128xf32>
      %147 = arith.addf %144, %146 : vector<8x128xf32>
      %c0_53 = arith.constant 0 : index
      %c0_54 = arith.constant 0 : index
      %c0_55 = arith.constant 0 : index
      %148 = vector.load %arg7[%c0_53, %c0_54, %c0_55] : memref<4x8x128xf32, #tpu.memory_space<vmem>>, vector<1x8x128xf32>
      %149 = vector.shape_cast %148 : vector<1x8x128xf32> to vector<8x128xf32>
      %150 = vector.shape_cast %147 : vector<8x128xf32> to vector<1x8x128xf32>
      tpu.vector_store %arg7[%c0_53, %c0_54, %c0_55], %150 {strides = array<i32>} : memref<4x8x128xf32, #tpu.memory_space<vmem>>, vector<1x8x128xf32>,
      %c0_56 = arith.constant 0 : index
      %c0_57 = arith.constant 0 : index
      %151 = vector.load %arg8[%c0_56, %c0_57] : memref<8x128xf32, #tpu.memory_space<vmem>>, vector<8x128xf32>
      tpu.vector_store %arg8[%c0_56, %c0_57], %147 {strides = array<i32>} : memref<8x128xf32, #tpu.memory_space<vmem>>, vector<8x128xf32>,
    } else {
    }
    return
  }
  func.func @transform_0(%arg0: i32, %arg1: i32) -> (i32, i32, i32) {
    %c1_i32 = arith.constant 1 : i32
    %0 = arith.subi %c1_i32, %arg0 : i32
    %1 = arith.muli %0, %arg1 : i32
    %c1_i32_0 = arith.constant 1 : i32
    %2 = arith.subi %c1_i32_0, %arg1 : i32
    %3 = arith.muli %arg0, %2 : i32
    %4 = arith.addi %1, %3 : i32
    %c0_i32 = arith.constant 0 : i32
    %c0_i32_1 = arith.constant 0 : i32
    %c0_i32_2 = arith.constant 0 : i32
    return %4, %c0_i32, %c0_i32_1 : i32, i32, i32
  }
  func.func @transform_1(%arg0: i32, %arg1: i32) -> (i32, i32, i32) {
    %c0_i32 = arith.constant 0 : i32
    %c0_i32_0 = arith.constant 0 : i32
    %c0_i32_1 = arith.constant 0 : i32
    return %arg0, %c0_i32, %c0_i32_0 : i32, i32, i32
  }
  func.func @transform_2(%arg0: i32, %arg1: i32) -> (i32, i32, i32) {
    %c0_i32 = arith.constant 0 : i32
    %c0_i32_0 = arith.constant 0 : i32
    %c0_i32_1 = arith.constant 0 : i32
    return %arg0, %c0_i32, %c0_i32_0 : i32, i32, i32
  }
  func.func @transform_3(%arg0: i32, %arg1: i32) -> (i32, i32, i32) {
    %c0_i32 = arith.constant 0 : i32
    %c0_i32_0 = arith.constant 0 : i32
    %c0_i32_1 = arith.constant 0 : i32
    return %arg0, %c0_i32, %c0_i32_0 : i32, i32, i32
  }
  func.func @transform_4(%arg0: i32, %arg1: i32) -> (i32, i32, i32) {
    %c0_i32 = arith.constant 0 : i32
    %c0_i32_0 = arith.constant 0 : i32
    %c0_i32_1 = arith.constant 0 : i32
    return %arg0, %c0_i32, %c0_i32_0 : i32, i32, i32
  }
  func.func @transform_5(%arg0: i32, %arg1: i32) -> (i32, i32, i32) {
    %c1_i32 = arith.constant 1 : i32
    %0 = arith.subi %c1_i32, %arg0 : i32
    %1 = arith.muli %0, %arg1 : i32
    %c1_i32_0 = arith.constant 1 : i32
    %2 = arith.subi %c1_i32_0, %arg1 : i32
    %3 = arith.muli %arg0, %2 : i32
    %4 = arith.addi %1, %3 : i32
    %c0_i32 = arith.constant 0 : i32
    %c0_i32_1 = arith.constant 0 : i32
    return %4, %c0_i32, %arg0 : i32, i32, i32
  }
}

</mosaic_0001>

<llo_original>
// kernel: tpu_custom_call.1
$region0: #{tpu_custom_call.1}
  #allocation0 [shape = 'u32[]', space=smem, size = 0x4, offset = 0x4, fixed_abs, tag = 'smem constant byte address 0x4 - core index']
  #allocation1 [shape = 'u32[144,128]{1,0:T(1,128)}', space=vmem, size = 0x12000, scoped, tag = 'internal scratch']
  #allocation2 [shape = 'f32[8,128]{1,0:T(8,128)}', space=vmem, size = 0x1000, scoped, tag = 'scratch operand']
  #allocation3 [shape = 'f32[4,8,384]{2,1,0:T(8,128)}', space=vmem, size = 0xc000, scoped, tag = 'scratch operand']
  %s0 = inlined_call_operand.hbm [shape: f32[8,8,128], index: 0, kind: input, shape index: {}]
  %s1 = inlined_call_operand.hbm [shape: f32[2,128,384], index: 1, kind: input, shape index: {}]
  %s2 = inlined_call_operand.hbm [shape: f32[2,128,384], index: 2, kind: input, shape index: {}]
  %s3 = inlined_call_operand.hbm [shape: f32[2,1,384], index: 3, kind: input, shape index: {}]
  %s4 = inlined_call_operand.vmem [shape: f32[2,1,384], index: 4, kind: input, shape index: {}]
  %s5 = inlined_call_operand.hbm [shape: f32[8,8,256], index: 5, kind: output, shape index: {}]
  %s6 = sld [smem:[#allocation0]]
  $region81: #{tpu_custom_call.1} parent=0
    _
  %s8 = ssub.s32 1, %s6
  %s9 = scalar_select 0, %s8, %s6
  $region1: #{tpu_custom_call.1} parent=0
    #allocation4 [shape = 'u8[32768]{0}', space=vmem, size = 0x8000, scoped, tag = 'input window, operand 0']
    #allocation5 [shape = 's32[2]{0}', space=sflag, size = 0x8, scoped, tag = 'scoped memory for tpu_custom_call.1']
    #allocation6 [shape = 's32[2]{0}', space=sflag, size = 0x8, scoped, tag = 'scoped memory for tpu_custom_call.1']
    #allocation7 [shape = 'u8[393216]{0}', space=vmem, size = 0x60000, scoped, tag = 'input window, operand 1']
    #allocation8 [shape = 's32[2]{0}', space=sflag, size = 0x8, scoped, tag = 'scoped memory for tpu_custom_call.1']
    #allocation9 [shape = 'u8[393216]{0}', space=vmem, size = 0x60000, scoped, tag = 'input window, operand 2']
    #allocation10 [shape = 'u8[3072]{0}', space=vmem, size = 0xc00, scoped, tag = 'input window, operand 3']
    #allocation11 [shape = 's32[2]{0}', space=sflag, size = 0x8, scoped, tag = 'scoped memory for tpu_custom_call.1']
    #allocation12 [shape = 'u8[32768]{0}', space=vmem, size = 0x8000, scoped, tag = 'output window, operand 0']
    %10 = vsyncpa [#allocation5], 0
    %s11 = scalar_lea.sflag [#allocation5], 1
    %12 = vsyncpa %s11, 0
    %13 = vsyncpa [#allocation8], 0
    %s14 = scalar_lea.sflag [#allocation8], 1
    %15 = vsyncpa %s14, 0
    %16 = vsyncpa [#allocation11], 0
    %s17 = scalar_lea.sflag [#allocation11], 1
    %18 = vsyncpa %s17, 0
    %19 = vsyncpa [#allocation6], 0
    %s20 = scalar_lea.sflag [#allocation6], 1
    %21 = vsyncpa %s20, 0
    loop: start=0, step=1, limit=6
    $region2: #{tpu_custom_call.1} parent=1 // loop_pre_header
      _
    $region3: #{tpu_custom_call.1} parent=1 // loop_header
      %s23 = sphi 0, %s27
      %p24 = scmp.ge.s32.totalorder %s23, 6
      %s30 = sphi 0, %s42
      %s31 = sphi 0, %s38
      %s32 = sphi 0, %s30
      %s33 = sphi 0, %s31
      %s34 = sphi 0, %s32
      %s35 = sphi 0, %s33
      %s55 = sphi 0, %s57
      %s58 = sphi 0, %s55
      %s59 = sphi 0, %s58
      %s75 = sphi 0, %s59
      %s81 = sphi 0, %s83
      %s84 = sphi 0, %s81
      %s85 = sphi 0, %s84
      %s101 = sphi 0, %s85
      %s107 = sphi 0, %s109
      %s110 = sphi 0, %s107
      %s111 = sphi 0, %s110
      %s127 = sphi 0, %s111
      %s133 = sphi 0, %s135
      %s136 = sphi 0, %s133
      %s137 = sphi 0, %s136
      %s153 = sphi 0, %s137
      %s159 = sphi 0, %s161
      %s162 = sphi 0, %s159
      %s163 = sphi 0, %s162
      %s179 = sphi 0, %s163
      %s197 = sphi 0, %s199
      %s200 = sphi 0, %s197
      %s201 = sphi 0, %s200
      %s217 = sphi 0, %s201
    $region4: #{tpu_custom_call.1} parent=1 // loop_header_branch
      %26 = sbr.rel (%p24) target = $region8
    $region5: #{tpu_custom_call.1} parent=1 // loop_body
      %s28 = ssub.s32 %s23, 1
      %s29 = ssub.s32 %s23, 2
      %s36 = sadd.s32 1, %s31
      %p37 = scmp.ge.s32.totalorder %s36, 2
      %s38 = scalar_select %p37, 0, %s36
      %s39 = sadd.s32 1, %s30
      %s40 = scalar_select %p37, %s39, %s30
      %p41 = scmp.ge.s32.totalorder %s40, 2
      %s42 = scalar_select %p41, 0, %s40
      %s43 = ssub.s32 1, %s30
      %s44 = smul.u32 %s43, %s31
      %s45 = ssub.s32 1, %s31
      %s46 = smul.u32 %s30, %s45
      %s47 = sadd.s32 %s44, %s46
      %s48 = ssub.s32 1, %s42
      %s49 = smul.u32 %s48, %s38
      %s50 = ssub.s32 1, %s38
      %s51 = smul.u32 %s42, %s50
      %s52 = sadd.s32 %s49, %s51
      %s53 = ssub.s32 %s47, %s52
      %p54 = scmp.eq.s32.totalorder %s53, 0
      %s56 = sadd.s32 %s55, 1
      %s57 = scalar_select %p54, %s55, %s56
      %p60 = pneg %p54
      %p61 = scmp.eq.s32.totalorder %s23, 3
      %p62 = por %p60, %p61
      %p63 = scmp.ne.s32.totalorder %s55, %s58
      %p64 = scmp.eq.s32.totalorder %s23, 0
      %p65 = por %p63, %p64
      %p66 = scmp.ne.s32.totalorder %s55, %s58
      %p67 = scmp.eq.s32.totalorder %s28, 3
      %p68 = por %p66, %p67
      %p69 = scmp.ne.s32.totalorder %s58, %s59
      %p70 = scmp.eq.s32.totalorder %s28, 0
      %p71 = por %p69, %p70
      %p72 = scmp.ne.s32.totalorder %s58, %s59
      %p73 = scmp.eq.s32.totalorder %s29, 3
      %p74 = por %p72, %p73
      %p76 = scmp.ne.s32.totalorder %s59, %s75
      %p77 = scmp.eq.s32.totalorder %s29, 0
      %p78 = por %p76, %p77
      %s79 = ssub.s32 %s30, %s42
      %p80 = scmp.eq.s32.totalorder %s79, 0
      %s82 = sadd.s32 %s81, 1
      %s83 = scalar_select %p80, %s81, %s82
      %p86 = pneg %p80
      %p87 = scmp.eq.s32.totalorder %s23, 3
      %p88 = por %p86, %p87
      %p89 = scmp.ne.s32.totalorder %s81, %s84
      %p90 = scmp.eq.s32.totalorder %s23, 0
      %p91 = por %p89, %p90
      %p92 = scmp.ne.s32.totalorder %s81, %s84
      %p93 = scmp.eq.s32.totalorder %s28, 3
      %p94 = por %p92, %p93
      %p95 = scmp.ne.s32.totalorder %s84, %s85
      %p96 = scmp.eq.s32.totalorder %s28, 0
      %p97 = por %p95, %p96
      %p98 = scmp.ne.s32.totalorder %s84, %s85
      %p99 = scmp.eq.s32.totalorder %s29, 3
      %p100 = por %p98, %p99
      %p102 = scmp.ne.s32.totalorder %s85, %s101
      %p103 = scmp.eq.s32.totalorder %s29, 0
      %p104 = por %p102, %p103
      %s105 = ssub.s32 %s30, %s42
      %p106 = scmp.eq.s32.totalorder %s105, 0
      %s108 = sadd.s32 %s107, 1
      %s109 = scalar_select %p106, %s107, %s108
      %p112 = pneg %p106
      %p113 = scmp.eq.s32.totalorder %s23, 3
      %p114 = por %p112, %p113
      %p115 = scmp.ne.s32.totalorder %s107, %s110
      %p116 = scmp.eq.s32.totalorder %s23, 0
      %p117 = por %p115, %p116
      %p118 = scmp.ne.s32.totalorder %s107, %s110
      %p119 = scmp.eq.s32.totalorder %s28, 3
      %p120 = por %p118, %p119
      %p121 = scmp.ne.s32.totalorder %s110, %s111
      %p122 = scmp.eq.s32.totalorder %s28, 0
      %p123 = por %p121, %p122
      %p124 = scmp.ne.s32.totalorder %s110, %s111
      %p125 = scmp.eq.s32.totalorder %s29, 3
      %p126 = por %p124, %p125
      %p128 = scmp.ne.s32.totalorder %s111, %s127
      %p129 = scmp.eq.s32.totalorder %s29, 0
      %p130 = por %p128, %p129
      %s131 = ssub.s32 %s30, %s42
      %p132 = scmp.eq.s32.totalorder %s131, 0
      %s134 = sadd.s32 %s133, 1
      %s135 = scalar_select %p132, %s133, %s134
      %p138 = pneg %p132
      %p139 = scmp.eq.s32.totalorder %s23, 3
      %p140 = por %p138, %p139
      %p141 = scmp.ne.s32.totalorder %s133, %s136
      %p142 = scmp.eq.s32.totalorder %s23, 0
      %p143 = por %p141, %p142
      %p144 = scmp.ne.s32.totalorder %s133, %s136
      %p145 = scmp.eq.s32.totalorder %s28, 3
      %p146 = por %p144, %p145
      %p147 = scmp.ne.s32.totalorder %s136, %s137
      %p148 = scmp.eq.s32.totalorder %s28, 0
      %p149 = por %p147, %p148
      %p150 = scmp.ne.s32.totalorder %s136, %s137
      %p151 = scmp.eq.s32.totalorder %s29, 3
      %p152 = por %p150, %p151
      %p154 = scmp.ne.s32.totalorder %s137, %s153
      %p155 = scmp.eq.s32.totalorder %s29, 0
      %p156 = por %p154, %p155
      %s157 = ssub.s32 %s30, %s42
      %p158 = scmp.eq.s32.totalorder %s157, 0
      %s160 = sadd.s32 %s159, 1
      %s161 = scalar_select %p158, %s159, %s160
      %p164 = pneg %p158
      %p165 = scmp.eq.s32.totalorder %s23, 3
      %p166 = por %p164, %p165
      %p167 = scmp.ne.s32.totalorder %s159, %s162
      %p168 = scmp.eq.s32.totalorder %s23, 0
      %p169 = por %p167, %p168
      %p170 = scmp.ne.s32.totalorder %s159, %s162
      %p171 = scmp.eq.s32.totalorder %s28, 3
      %p172 = por %p170, %p171
      %p173 = scmp.ne.s32.totalorder %s162, %s163
      %p174 = scmp.eq.s32.totalorder %s28, 0
      %p175 = por %p173, %p174
      %p176 = scmp.ne.s32.totalorder %s162, %s163
      %p177 = scmp.eq.s32.totalorder %s29, 3
      %p178 = por %p176, %p177
      %p180 = scmp.ne.s32.totalorder %s163, %s179
      %p181 = scmp.eq.s32.totalorder %s29, 0
      %p182 = por %p180, %p181
      %s183 = ssub.s32 1, %s30
      %s184 = smul.u32 %s183, %s31
      %s185 = ssub.s32 1, %s31
      %s186 = smul.u32 %s30, %s185
      %s187 = sadd.s32 %s184, %s186
      %s188 = ssub.s32 1, %s42
      %s189 = smul.u32 %s188, %s38
      %s190 = ssub.s32 1, %s38
      %s191 = smul.u32 %s42, %s190
      %s192 = sadd.s32 %s189, %s191
      %s193 = ssub.s32 %s187, %s192
      %s194 = ssub.s32 %s30, %s42
      %s195 = sor.u32 %s193, %s194
      %p196 = scmp.eq.s32.totalorder %s195, 0
      %s198 = sadd.s32 %s197, 1
      %s199 = scalar_select %p196, %s197, %s198
      %p202 = pneg %p196
      %p203 = scmp.eq.s32.totalorder %s23, 3
      %p204 = por %p202, %p203
      %p205 = scmp.ne.s32.totalorder %s197, %s200
      %p206 = scmp.eq.s32.totalorder %s23, 0
      %p207 = por %p205, %p206
      %p208 = scmp.ne.s32.totalorder %s197, %s200
      %p209 = scmp.eq.s32.totalorder %s28, 3
      %p210 = por %p208, %p209
      %p211 = scmp.ne.s32.totalorder %s200, %s201
      %p212 = scmp.eq.s32.totalorder %s28, 0
      %p213 = por %p211, %p212
      %p214 = scmp.ne.s32.totalorder %s200, %s201
      %p215 = scmp.eq.s32.totalorder %s29, 3
      %p216 = por %p214, %p215
      %p218 = scmp.ne.s32.totalorder %s201, %s217
      %p219 = scmp.eq.s32.totalorder %s29, 0
      %p220 = por %p218, %p219
      %p221 = scmp.le.s32.totalorder 1, %s23
      %p222 = scmp.lt.s32.totalorder %s23, 5
      %p223 = pnand %p221, %p222
      %p224 = pneg %p223
      // Predicated region
      $region9: #{tpu_custom_call.1} parent=5 // pred_check
        _
      $region10: #{tpu_custom_call.1} parent=5 // pred_check_branch
        %226 = sbr.rel (%p223) target = $region12
      $region11: #{tpu_custom_call.1} parent=5 // pred_region
        %s227 = ssub.s32 %s23, 1
      $region12: #{tpu_custom_call.1} parent=5 // pred_fallthru
        _
      %p228 = scmp.lt.s32.totalorder %s23, 4
      // Predicated region
      $region13: #{tpu_custom_call.1} parent=5 // pred_check
        %p229 = pneg %p228
      $region14: #{tpu_custom_call.1} parent=5 // pred_check_branch
        %231 = sbr.rel (%p229) target = $region16
      $region15: #{tpu_custom_call.1} parent=5 // pred_region
        // Predicated region
        $region17: #{tpu_custom_call.1} parent=15 // pred_check
          %p232 = pneg %p65
        $region18: #{tpu_custom_call.1} parent=15 // pred_check_branch
          %234 = sbr.rel (%p232) target = $region20
        $region19: #{tpu_custom_call.1} parent=15 // pred_region
          %s235 = sand.u32 %s55, 1
          %s236 = scalar_lea.sflag [#allocation5], %s235
          %s237 = sand.u32 %s55, 1
          %s238 = smul.addr %s237, 32
          %s239 = scalar_lea.vmem [#allocation4], %s238
          %s240 = ssub.s32 1, %s30
          %s241 = smul.u32 %s240, %s31
          %s242 = ssub.s32 1, %s31
          %s243 = smul.u32 %s30, %s242
          %s244 = sadd.s32 %s241, %s243
          %s245 = smul.u32 4, %s244
          %s247 = ssub.s32 512, 512
          %248 = vsyncadd %s236, %s247
          %s249 = smul.addr %s245, 128
          %s250 = scalar_lea.hbm %s0, %s249
          %s251 = sshll.u32 %s239, 4
          %s252 = int_to_ptr.vmem [resolvable:$true] %s251
          %257 = dma.hbm_to_vmem [thread:$0]  %s250, 512, %s252, %s236, 128, 128, 8
        $region20: #{tpu_custom_call.1} parent=15 // pred_fallthru
          _
        // Predicated region
        $region21: #{tpu_custom_call.1} parent=15 // pred_check
          %p258 = pneg %p91
        $region22: #{tpu_custom_call.1} parent=15 // pred_check_branch
          %260 = sbr.rel (%p258) target = $region24
        $region23: #{tpu_custom_call.1} parent=15 // pred_region
          %s261 = sand.u32 %s23, 1
          %s262 = scalar_lea.sflag [#allocation8], %s261
          %s263 = sand.u32 %s81, 1
          %s264 = smul.addr %s263, 384
          %s265 = scalar_lea.vmem [#allocation7], %s264
          %s267 = ssub.s32 6144, 6144
          %268 = vsyncadd %s262, %s267
          %s269 = smul.addr %s30, 48
          %s270 = smul.addr %s269, 128
          %s271 = scalar_lea.hbm %s1, %s270
          %s272 = sshll.u32 %s265, 4
          %s273 = int_to_ptr.vmem [resolvable:$true] %s272
          %278 = dma.hbm_to_vmem [thread:$0]  %s271, 6144, %s273, %s262, 384, 384, 24
        $region24: #{tpu_custom_call.1} parent=15 // pred_fallthru
          _
        // Predicated region
        $region25: #{tpu_custom_call.1} parent=15 // pred_check
          %p279 = pneg %p117
        $region26: #{tpu_custom_call.1} parent=15 // pred_check_branch
          %281 = sbr.rel (%p279) target = $region28
        $region27: #{tpu_custom_call.1} parent=15 // pred_region
          %s282 = sand.u32 %s23, 1
          %s283 = scalar_lea.sflag [#allocation8], %s282
          %s284 = sand.u32 %s107, 1
          %s285 = smul.addr %s284, 384
          %s286 = scalar_lea.vmem [#allocation9], %s285
          %s288 = ssub.s32 6144, 6144
          %289 = vsyncadd %s283, %s288
          %s290 = smul.addr %s30, 48
          %s291 = smul.addr %s290, 128
          %s292 = scalar_lea.hbm %s2, %s291
          %s293 = sshll.u32 %s286, 4
          %s294 = int_to_ptr.vmem [resolvable:$true] %s293
          %299 = dma.hbm_to_vmem [thread:$0]  %s292, 6144, %s294, %s283, 384, 384, 24
        $region28: #{tpu_custom_call.1} parent=15 // pred_fallthru
          _
        // Predicated region
        $region29: #{tpu_custom_call.1} parent=15 // pred_check
          %p300 = pneg %p143
        $region30: #{tpu_custom_call.1} parent=15 // pred_check_branch
          %302 = sbr.rel (%p300) target = $region32
        $region31: #{tpu_custom_call.1} parent=15 // pred_region
          %s303 = sand.u32 %s133, 1
          %s304 = scalar_lea.sflag [#allocation11], %s303
          %s305 = sand.u32 %s133, 1
          %s306 = smul.addr %s305, 3
          %s307 = scalar_lea.vmem [#allocation10], %s306
          %s309 = ssub.s32 48, 48
          %310 = vsyncadd %s304, %s309
          %s311 = smul.addr %s30, 3
          %s312 = smul.addr %s311, 16
          %s313 = scalar_lea.hbm %s3, %s312
          %s315 = sshll.u32 %s307, 4
          %s316 = int_to_ptr.vmem [resolvable:$true] %s315
          %318 = dma.hbm_to_vmem [thread:$0]  %s313, 48, %s316, %s304
        $region32: #{tpu_custom_call.1} parent=15 // pred_fallthru
          _
        // Predicated region
        $region33: #{tpu_custom_call.1} parent=15 // pred_check
          %p319 = pneg %p169
        $region34: #{tpu_custom_call.1} parent=15 // pred_check_branch
          %321 = sbr.rel (%p319) target = $region36
        $region35: #{tpu_custom_call.1} parent=15 // pred_region
          %p322 = scmp.lt.s32.totalorder %s30, 1
          %s323 = scalar_select %p322, %s30, 1
          %s324 = smul.addr %s323, 3
          %s325 = scalar_lea.vmem %s4, %s324
        $region36: #{tpu_custom_call.1} parent=15 // pred_fallthru
          _
      $region16: #{tpu_custom_call.1} parent=5 // pred_fallthru
        _
      %p326 = scmp.le.s32.totalorder 1, %s23
      %p327 = scmp.lt.s32.totalorder %s23, 5
      %p328 = pnand %p326, %p327
      %p329 = pneg %p328
      // Predicated region
      $region37: #{tpu_custom_call.1} parent=5 // pred_check
        _
      $region38: #{tpu_custom_call.1} parent=5 // pred_check_branch
        %331 = sbr.rel (%p328) target = $region40
      $region39: #{tpu_custom_call.1} parent=5 // pred_region
        %s332 = ssub.s32 %s23, 1
        %s333 = sand.u32 %s58, 1
        %s334 = scalar_lea.sflag [#allocation5], %s333
        %s335 = sand.u32 %s58, 1
        %s336 = smul.addr %s335, 32
        %s337 = scalar_lea.vmem [#allocation4], %s336
        // Predicated region
        $region41: #{tpu_custom_call.1} parent=39 // pred_check
          %p338 = pneg %p71
        $region42: #{tpu_custom_call.1} parent=39 // pred_check_branch
          %340 = sbr.rel (%p338) target = $region44
        $region43: #{tpu_custom_call.1} parent=39 // pred_region
          %341 = dma.done %s334, 512
        $region44: #{tpu_custom_call.1} parent=39 // pred_fallthru
          _
        %s342 = sand.u32 %s28, 1
        %s343 = scalar_lea.sflag [#allocation8], %s342
        %s344 = sand.u32 %s84, 1
        %s345 = smul.addr %s344, 384
        %s346 = scalar_lea.vmem [#allocation7], %s345
        // Predicated region
        $region45: #{tpu_custom_call.1} parent=39 // pred_check
          %p347 = pneg %p97
        $region46: #{tpu_custom_call.1} parent=39 // pred_check_branch
          %349 = sbr.rel (%p347) target = $region48
        $region47: #{tpu_custom_call.1} parent=39 // pred_region
          %350 = dma.done %s343, 6144
        $region48: #{tpu_custom_call.1} parent=39 // pred_fallthru
          _
        %s351 = sand.u32 %s28, 1
        %s352 = scalar_lea.sflag [#allocation8], %s351
        %s353 = sand.u32 %s110, 1
        %s354 = smul.addr %s353, 384
        %s355 = scalar_lea.vmem [#allocation9], %s354
        // Predicated region
        $region49: #{tpu_custom_call.1} parent=39 // pred_check
          %p356 = pneg %p123
        $region50: #{tpu_custom_call.1} parent=39 // pred_check_branch
          %358 = sbr.rel (%p356) target = $region52
        $region51: #{tpu_custom_call.1} parent=39 // pred_region
          %359 = dma.done %s352, 6144
        $region52: #{tpu_custom_call.1} parent=39 // pred_fallthru
          _
        %s360 = sand.u32 %s136, 1
        %s361 = scalar_lea.sflag [#allocation11], %s360
        %s362 = sand.u32 %s136, 1
        %s363 = smul.addr %s362, 3
        %s364 = scalar_lea.vmem [#allocation10], %s363
        // Predicated region
        $region53: #{tpu_custom_call.1} parent=39 // pred_check
          %p365 = pneg %p149
        $region54: #{tpu_custom_call.1} parent=39 // pred_check_branch
          %367 = sbr.rel (%p365) target = $region56
        $region55: #{tpu_custom_call.1} parent=39 // pred_region
          %368 = dma.done %s361, 48
        $region56: #{tpu_custom_call.1} parent=39 // pred_fallthru
          _
        %s369 = sand.u32 %s58, 1
        %s370 = scalar_lea.sflag [#allocation5], %s369
        %s371 = sand.u32 %s58, 1
        %s372 = smul.addr %s371, 32
        %s373 = scalar_lea.vmem [#allocation4], %s372
        %p374 = pneg %p71
        %p375 = pneg %p68
        %s376 = sand.u32 %s28, 1
        %s377 = scalar_lea.sflag [#allocation8], %s376
        %s378 = sand.u32 %s84, 1
        %s379 = smul.addr %s378, 384
        %s380 = scalar_lea.vmem [#allocation7], %s379
        %p381 = pneg %p97
        %p382 = pneg %p94
        %s383 = sand.u32 %s28, 1
        %s384 = scalar_lea.sflag [#allocation8], %s383
        %s385 = sand.u32 %s110, 1
        %s386 = smul.addr %s385, 384
        %s387 = scalar_lea.vmem [#allocation9], %s386
        %p388 = pneg %p123
        %p389 = pneg %p120
        %s390 = sand.u32 %s136, 1
        %s391 = scalar_lea.sflag [#allocation11], %s390
        %s392 = sand.u32 %s136, 1
        %s393 = smul.addr %s392, 3
        %s394 = scalar_lea.vmem [#allocation10], %s393
        %p395 = pneg %p149
        %p396 = pneg %p146
        %p397 = scmp.lt.s32.totalorder %s32, 1
        %s398 = scalar_select %p397, %s32, 1
        %s399 = smul.addr %s398, 3
        %s400 = scalar_lea.vmem %s4, %s399
        %p401 = pneg %p175
        %p402 = pneg %p172
        %p403 = pneg %p213
        %p404 = pneg %p210
        %s405 = sand.u32 %s200, 1
        %s406 = scalar_lea.sflag [#allocation6], %s405
        %s407 = sand.u32 %s200, 1
        %s408 = smul.addr %s407, 32
        %s409 = scalar_lea.vmem [#allocation12], %s408
        %s410 = ssub.s32 1, %s32
        %s411 = smul.u32 %s410, %s33
        %s412 = ssub.s32 1, %s33
        %s413 = smul.u32 %s32, %s412
        %s414 = sadd.s32 %s411, %s413
        %s415 = smul.u32 4, %s414
        %p416 = scmp.lt.s32.totalorder %s32, 1
        %s417 = scalar_select %p416, %s32, 1
        %s418 = smul.addr %s417, 3
        %s419 = scalar_lea.vmem %s4, %s418
        %s420 = ssub.s32 1, %s32
        %s421 = smul.u32 %s420, %s33
        %s422 = ssub.s32 1, %s33
        %s423 = smul.u32 %s32, %s422
        %s424 = sadd.s32 %s421, %s423
        %s425 = smul.u32 4, %s424
        %v426 = vld [vmem:[%s337] sm:$0xff]
        %v427 = vld [vmem:[%s337 + $0x8] sm:$0xff]
        %v428 = vld [vmem:[%s337 + $0x10] sm:$0xff]
        %v429 = vld [vmem:[%s337 + $0x18] sm:$0xff]
        %v430 = vld [vmem:[%s346] sm:$0xff]
        %v431 = vld [vmem:[%s346 + $0x8] sm:$0xff]
        %v432 = vld [vmem:[%s346 + $0x10] sm:$0xff]
        %v433 = vld [vmem:[%s346 + $0x18] sm:$0xff]
        %v434 = vld [vmem:[%s346 + $0x20] sm:$0xff]
        %v435 = vld [vmem:[%s346 + $0x28] sm:$0xff]
        %v436 = vld [vmem:[%s346 + $0x30] sm:$0xff]
        %v437 = vld [vmem:[%s346 + $0x38] sm:$0xff]
        %v438 = vld [vmem:[%s346 + $0x40] sm:$0xff]
        %v439 = vld [vmem:[%s346 + $0x48] sm:$0xff]
        %v440 = vld [vmem:[%s346 + $0x50] sm:$0xff]
        %v441 = vld [vmem:[%s346 + $0x58] sm:$0xff]
        %v442 = vld [vmem:[%s346 + $0x60] sm:$0xff]
        %v443 = vld [vmem:[%s346 + $0x68] sm:$0xff]
        %v444 = vld [vmem:[%s346 + $0x70] sm:$0xff]
        %v445 = vld [vmem:[%s346 + $0x78] sm:$0xff]
        %v446 = vld [vmem:[%s346 + $0x80] sm:$0xff]
        %v447 = vld [vmem:[%s346 + $0x88] sm:$0xff]
        %v448 = vld [vmem:[%s346 + $0x90] sm:$0xff]
        %v449 = vld [vmem:[%s346 + $0x98] sm:$0xff]
        %v450 = vld [vmem:[%s346 + $0xa0] sm:$0xff]
        %v451 = vld [vmem:[%s346 + $0xa8] sm:$0xff]
        %v452 = vld [vmem:[%s346 + $0xb0] sm:$0xff]
        %v453 = vld [vmem:[%s346 + $0xb8] sm:$0xff]
        %v454 = vld [vmem:[%s346 + $0xc0] sm:$0xff]
        %v455 = vld [vmem:[%s346 + $0xc8] sm:$0xff]
        %v456 = vld [vmem:[%s346 + $0xd0] sm:$0xff]
        %v457 = vld [vmem:[%s346 + $0xd8] sm:$0xff]
        %v458 = vld [vmem:[%s346 + $0xe0] sm:$0xff]
        %v459 = vld [vmem:[%s346 + $0xe8] sm:$0xff]
        %v460 = vld [vmem:[%s346 + $0xf0] sm:$0xff]
        %v461 = vld [vmem:[%s346 + $0xf8] sm:$0xff]
        %v462 = vld [vmem:[%s346 + $0x100] sm:$0xff]
        %v463 = vld [vmem:[%s346 + $0x108] sm:$0xff]
        %v464 = vld [vmem:[%s346 + $0x110] sm:$0xff]
        %v465 = vld [vmem:[%s346 + $0x118] sm:$0xff]
        %v466 = vld [vmem:[%s346 + $0x120] sm:$0xff]
        %v467 = vld [vmem:[%s346 + $0x128] sm:$0xff]
        %v468 = vld [vmem:[%s346 + $0x130] sm:$0xff]
        %v469 = vld [vmem:[%s346 + $0x138] sm:$0xff]
        %v470 = vld [vmem:[%s346 + $0x140] sm:$0xff]
        %v471 = vld [vmem:[%s346 + $0x148] sm:$0xff]
        %v472 = vld [vmem:[%s346 + $0x150] sm:$0xff]
        %v473 = vld [vmem:[%s346 + $0x158] sm:$0xff]
        %v474 = vld [vmem:[%s346 + $0x160] sm:$0xff]
        %v475 = vld [vmem:[%s346 + $0x168] sm:$0xff]
        %v476 = vld [vmem:[%s346 + $0x170] sm:$0xff]
        %v477 = vld [vmem:[%s346 + $0x178] sm:$0xff]
        %v478 = vld [vmem:[%s364] sm:$0x7]
        %v480 = vlaneseq
        %v481 = vshrl.u32 %v480, 7
        %v482 = vsub.s32 0, %v481
        %v483 = vrot.slane %v478, %v482
        %v484 = vlaneseq
        %v485 = vshrl.u32 %v484, 7
        %v486 = vsub.s32 1, %v485
        %v487 = vrot.slane %v478, %v486
        %v488 = vlaneseq
        %v489 = vshrl.u32 %v488, 7
        %v490 = vsub.s32 2, %v489
        %v491 = vrot.slane %v478, %v490
        %495 = vmatprep.subr.mxu0 %v476
        %496 = vmatpush1.msra.mxu0 %v475
        %497 = vmatprep.subr.mxu0 %v473
        %498 = vmatpush1.msra.mxu0 %v472
        %499 = vmatprep.subr.mxu0 %v470
        %500 = vmatpush1.msra.mxu0 %v469
        %501 = vmatprep.subr.mxu0 %v467
        %502 = vmatpush1.msra.mxu0 %v466
        %503 = vmatprep.subr.mxu0 %v464
        %504 = vmatpush1.msra.mxu0 %v463
        %505 = vmatprep.subr.mxu0 %v461
        %506 = vmatpush1.msra.mxu0 %v460
        %507 = vmatprep.subr.mxu0 %v458
        %508 = vmatpush1.msra.mxu0 %v457
        %509 = vmatprep.subr.mxu0 %v455
        %510 = vmatpush1.msra.mxu0 %v454
        %511 = vmatprep.subr.mxu0 %v452
        %512 = vmatpush1.msra.mxu0 %v451
        %513 = vmatprep.subr.mxu0 %v449
        %514 = vmatpush1.msra.mxu0 %v448
        %515 = vmatprep.subr.mxu0 %v446
        %516 = vmatpush1.msra.mxu0 %v445
        %517 = vmatprep.subr.mxu0 %v443
        %518 = vmatpush1.msra.mxu0 %v442
        %519 = vmatprep.subr.mxu0 %v440
        %520 = vmatpush1.msra.mxu0 %v439
        %521 = vmatprep.subr.mxu0 %v437
        %522 = vmatpush1.msra.mxu0 %v436
        %523 = vmatprep.subr.mxu0 %v434
        %524 = vmatpush1.msra.mxu0 %v433
        %525 = vmatprep.subr.mxu0 %v431
        %526 = vmatpush1.msra.mxu0 %v430
        %527 = vmatprep.subr.mxu0 0.0
        %528 = vmatpush2.msra.mxu0 0.0
        %529 = vmatprep.subr.mxu0 0.0
        %530 = vmatpush2.msra.mxu0 0.0
        %531 = vmatprep.subr.mxu0 0.0
        %532 = vmatpush2.msra.mxu0 0.0
        %533 = vmatprep.subr.mxu0 0.0
        %534 = vmatpush2.msra.mxu0 0.0
        %535 = vmatprep.subr.mxu0 0.0
        %536 = vmatpush2.msra.mxu0 0.0
        %537 = vmatprep.subr.mxu0 0.0
        %538 = vmatpush2.msra.mxu0 0.0
        %539 = vmatprep.subr.mxu0 0.0
        %540 = vmatpush2.msra.mxu0 0.0
        %541 = vmatprep.subr.mxu0 0.0
        %542 = vmatpush2.msra.mxu0 0.0
        %543 = vmatprep.subr.mxu0 0.0
        %544 = vmatpush2.msra.mxu0 0.0
        %545 = vmatprep.subr.mxu0 0.0
        %546 = vmatpush2.msra.mxu0 0.0
        %547 = vmatprep.subr.mxu0 0.0
        %548 = vmatpush2.msra.mxu0 0.0
        %549 = vmatprep.subr.mxu0 0.0
        %550 = vmatpush2.msra.mxu0 0.0
        %551 = vmatprep.subr.mxu0 0.0
        %552 = vmatpush2.msra.mxu0 0.0
        %553 = vmatprep.subr.mxu0 0.0
        %554 = vmatpush2.msra.mxu0 0.0
        %555 = vmatprep.subr.mxu0 0.0
        %556 = vmatpush2.msra.mxu0 0.0
        %557 = vmatprep.subr.mxu0 0.0
        %558 = vmatpush2.msra.mxu0 0.0
        %559 = vmatprep.mubr.f32.mxu0 0.0
        %560 = vmatmul.mubr.f32.gmra.mxu0 %v426
        %v561 = vpop.f32.mrf.mxu0
        %v562 = vadd.f32 %v483, %v561
        %v563 = vpop.f32.mrf.mxu0
        %v564 = vadd.f32 %v487, %v563
        %565 = vmatprep.mubr.f32.mxu0 0.0
        %566 = vmatmul.mubr.f32.gmra.mxu0 %v427
        %v567 = vpop.f32.mrf.mxu0
        %v568 = vadd.f32 %v483, %v567
        %v569 = vpop.f32.mrf.mxu0
        %v570 = vadd.f32 %v487, %v569
        %571 = vmatprep.mubr.f32.mxu0 0.0
        %572 = vmatmul.mubr.f32.gmra.mxu0 %v428
        %v573 = vpop.f32.mrf.mxu0
        %v574 = vadd.f32 %v483, %v573
        %v575 = vpop.f32.mrf.mxu0
        %v576 = vadd.f32 %v487, %v575
        %577 = vmatprep.mubr.f32.mxu0 0.0
        %578 = vmatmul.mubr.f32.gmra.mxu0 %v429
        %v579 = vpop.f32.mrf.mxu0
        %v580 = vadd.f32 %v483, %v579
        %v581 = vpop.f32.mrf.mxu0
        %v582 = vadd.f32 %v487, %v581
        %583 = vdwg.mxu0
        %584 = vmatprep.subr.mxu0 0.0
        %585 = vmatpush1.msra.mxu0 %v477
        %586 = vmatprep.subr.mxu0 0.0
        %587 = vmatpush1.msra.mxu0 %v474
        %588 = vmatprep.subr.mxu0 0.0
        %589 = vmatpush1.msra.mxu0 %v471
        %590 = vmatprep.subr.mxu0 0.0
        %591 = vmatpush1.msra.mxu0 %v468
        %592 = vmatprep.subr.mxu0 0.0
        %593 = vmatpush1.msra.mxu0 %v465
        %594 = vmatprep.subr.mxu0 0.0
        %595 = vmatpush1.msra.mxu0 %v462
        %596 = vmatprep.subr.mxu0 0.0
        %597 = vmatpush1.msra.mxu0 %v459
        %598 = vmatprep.subr.mxu0 0.0
        %599 = vmatpush1.msra.mxu0 %v456
        %600 = vmatprep.subr.mxu0 0.0
        %601 = vmatpush1.msra.mxu0 %v453
        %602 = vmatprep.subr.mxu0 0.0
        %603 = vmatpush1.msra.mxu0 %v450
        %604 = vmatprep.subr.mxu0 0.0
        %605 = vmatpush1.msra.mxu0 %v447
        %606 = vmatprep.subr.mxu0 0.0
        %607 = vmatpush1.msra.mxu0 %v444
        %608 = vmatprep.subr.mxu0 0.0
        %609 = vmatpush1.msra.mxu0 %v441
        %610 = vmatprep.subr.mxu0 0.0
        %611 = vmatpush1.msra.mxu0 %v438
        %612 = vmatprep.subr.mxu0 0.0
        %613 = vmatpush1.msra.mxu0 %v435
        %614 = vmatprep.subr.mxu0 0.0
        %615 = vmatpush1.msra.mxu0 %v432
        %616 = vmatprep.subr.mxu0 0.0
        %617 = vmatpush2.msra.mxu0 0.0
        %618 = vmatprep.subr.mxu0 0.0
        %619 = vmatpush2.msra.mxu0 0.0
        %620 = vmatprep.subr.mxu0 0.0
        %621 = vmatpush2.msra.mxu0 0.0
        %622 = vmatprep.subr.mxu0 0.0
        %623 = vmatpush2.msra.mxu0 0.0
        %624 = vmatprep.subr.mxu0 0.0
        %625 = vmatpush2.msra.mxu0 0.0
        %626 = vmatprep.subr.mxu0 0.0
        %627 = vmatpush2.msra.mxu0 0.0
        %628 = vmatprep.subr.mxu0 0.0
        %629 = vmatpush2.msra.mxu0 0.0
        %630 = vmatprep.subr.mxu0 0.0
        %631 = vmatpush2.msra.mxu0 0.0
        %632 = vmatprep.subr.mxu0 0.0
        %633 = vmatpush2.msra.mxu0 0.0
        %634 = vmatprep.subr.mxu0 0.0
        %635 = vmatpush2.msra.mxu0 0.0
        %636 = vmatprep.subr.mxu0 0.0
        %637 = vmatpush2.msra.mxu0 0.0
        %638 = vmatprep.subr.mxu0 0.0
        %639 = vmatpush2.msra.mxu0 0.0
        %640 = vmatprep.subr.mxu0 0.0
        %641 = vmatpush2.msra.mxu0 0.0
        %642 = vmatprep.subr.mxu0 0.0
        %643 = vmatpush2.msra.mxu0 0.0
        %644 = vmatprep.subr.mxu0 0.0
        %645 = vmatpush2.msra.mxu0 0.0
        %646 = vmatprep.subr.mxu0 0.0
        %647 = vmatpush2.msra.mxu0 0.0
        %648 = vmatprep.mubr.f32.mxu0 0.0
        %649 = vmatmul.mubr.f32.gmra.mxu0 %v426
        %v650 = vpop.f32.mrf.mxu0
        %v651 = vadd.f32 %v491, %v650
        %v652 = vpop.f32.mrf.mxu0
        %653 = vmatprep.mubr.f32.mxu0 0.0
        %654 = vmatmul.mubr.f32.gmra.mxu0 %v427
        %v655 = vpop.f32.mrf.mxu0
        %v656 = vadd.f32 %v491, %v655
        %v657 = vpop.f32.mrf.mxu0
        %658 = vmatprep.mubr.f32.mxu0 0.0
        %659 = vmatmul.mubr.f32.gmra.mxu0 %v428
        %v660 = vpop.f32.mrf.mxu0
        %v661 = vadd.f32 %v491, %v660
        %v662 = vpop.f32.mrf.mxu0
        %663 = vmatprep.mubr.f32.mxu0 0.0
        %664 = vmatmul.mubr.f32.gmra.mxu0 %v429
        %v665 = vpop.f32.mrf.mxu0
        %v666 = vadd.f32 %v491, %v665
        %v667 = vpop.f32.mrf.mxu0
        %668 = vdwg.mxu0
        %669 = vst [vmem:[#allocation3] sm:$0xff] %v562
        %670 = vst [vmem:[#allocation3 + $0x8] sm:$0xff] %v564
        %671 = vst [vmem:[#allocation3 + $0x10] sm:$0xff] %v651
        %672 = vst [vmem:[#allocation3 + $0x18] sm:$0xff] %v568
        %673 = vst [vmem:[#allocation3 + $0x20] sm:$0xff] %v570
        %674 = vst [vmem:[#allocation3 + $0x28] sm:$0xff] %v656
        %675 = vst [vmem:[#allocation3 + $0x30] sm:$0xff] %v574
        %676 = vst [vmem:[#allocation3 + $0x38] sm:$0xff] %v576
        %677 = vst [vmem:[#allocation3 + $0x40] sm:$0xff] %v661
        %678 = vst [vmem:[#allocation3 + $0x48] sm:$0xff] %v580
        %679 = vst [vmem:[#allocation3 + $0x50] sm:$0xff] %v582
        %680 = vst [vmem:[#allocation3 + $0x58] sm:$0xff] %v666
        %v681 = vld [vmem:[%s355] sm:$0xff]
        %v682 = vld [vmem:[%s355 + $0x8] sm:$0xff]
        %v683 = vld [vmem:[%s355 + $0x10] sm:$0xff]
        %v684 = vld [vmem:[%s355 + $0x18] sm:$0xff]
        %v685 = vld [vmem:[%s355 + $0x20] sm:$0xff]
        %v686 = vld [vmem:[%s355 + $0x28] sm:$0xff]
        %v687 = vld [vmem:[%s355 + $0x30] sm:$0xff]
        %v688 = vld [vmem:[%s355 + $0x38] sm:$0xff]
        %v689 = vld [vmem:[%s355 + $0x40] sm:$0xff]
        %v690 = vld [vmem:[%s355 + $0x48] sm:$0xff]
        %v691 = vld [vmem:[%s355 + $0x50] sm:$0xff]
        %v692 = vld [vmem:[%s355 + $0x58] sm:$0xff]
        %v693 = vld [vmem:[%s355 + $0x60] sm:$0xff]
        %v694 = vld [vmem:[%s355 + $0x68] sm:$0xff]
        %v695 = vld [vmem:[%s355 + $0x70] sm:$0xff]
        %v696 = vld [vmem:[%s355 + $0x78] sm:$0xff]
        %v697 = vld [vmem:[%s355 + $0x80] sm:$0xff]
        %v698 = vld [vmem:[%s355 + $0x88] sm:$0xff]
        %v699 = vld [vmem:[%s355 + $0x90] sm:$0xff]
        %v700 = vld [vmem:[%s355 + $0x98] sm:$0xff]
        %v701 = vld [vmem:[%s355 + $0xa0] sm:$0xff]
        %v702 = vld [vmem:[%s355 + $0xa8] sm:$0xff]
        %v703 = vld [vmem:[%s355 + $0xb0] sm:$0xff]
        %v704 = vld [vmem:[%s355 + $0xb8] sm:$0xff]
        %v705 = vld [vmem:[%s355 + $0xc0] sm:$0xff]
        %v706 = vld [vmem:[%s355 + $0xc8] sm:$0xff]
        %v707 = vld [vmem:[%s355 + $0xd0] sm:$0xff]
        %v708 = vld [vmem:[%s355 + $0xd8] sm:$0xff]
        %v709 = vld [vmem:[%s355 + $0xe0] sm:$0xff]
        %v710 = vld [vmem:[%s355 + $0xe8] sm:$0xff]
        %v711 = vld [vmem:[%s355 + $0xf0] sm:$0xff]
        %v712 = vld [vmem:[%s355 + $0xf8] sm:$0xff]
        %v713 = vld [vmem:[%s355 + $0x100] sm:$0xff]
        %v714 = vld [vmem:[%s355 + $0x108] sm:$0xff]
        %v715 = vld [vmem:[%s355 + $0x110] sm:$0xff]
        %v716 = vld [vmem:[%s355 + $0x118] sm:$0xff]
        %v717 = vld [vmem:[%s355 + $0x120] sm:$0xff]
        %v718 = vld [vmem:[%s355 + $0x128] sm:$0xff]
        %v719 = vld [vmem:[%s355 + $0x130] sm:$0xff]
        %v720 = vld [vmem:[%s355 + $0x138] sm:$0xff]
        %v721 = vld [vmem:[%s355 + $0x140] sm:$0xff]
        %v722 = vld [vmem:[%s355 + $0x148] sm:$0xff]
        %v723 = vld [vmem:[%s355 + $0x150] sm:$0xff]
        %v724 = vld [vmem:[%s355 + $0x158] sm:$0xff]
        %v725 = vld [vmem:[%s355 + $0x160] sm:$0xff]
        %v726 = vld [vmem:[%s355 + $0x168] sm:$0xff]
        %v727 = vld [vmem:[%s355 + $0x170] sm:$0xff]
        %v728 = vld [vmem:[%s355 + $0x178] sm:$0xff]
        %v729 = vld [vmem:[%s419] sm:$0x7]
        %v731 = vlaneseq
        %v732 = vshrl.u32 %v731, 7
        %v733 = vsub.s32 0, %v732
        %v734 = vrot.slane %v729, %v733
        %v735 = vlaneseq
        %v736 = vshrl.u32 %v735, 7
        %v737 = vsub.s32 1, %v736
        %v738 = vrot.slane %v729, %v737
        %v739 = vlaneseq
        %v740 = vshrl.u32 %v739, 7
        %v741 = vsub.s32 2, %v740
        %v742 = vrot.slane %v729, %v741
        %p746 = scmp.eq.s32.totalorder %s33, 0
        // Predicated region
        $region57: #{tpu_custom_call.1} parent=39 // pred_check
          %p747 = pneg %p746
        $region58: #{tpu_custom_call.1} parent=39 // pred_check_branch
          %749 = sbr.rel (%p747) target = $region60
        $region59: #{tpu_custom_call.1} parent=39 // pred_region
          %750 = vst [vmem:[#allocation2] sm:$0xff] 0.0
        $region60: #{tpu_custom_call.1} parent=39 // pred_fallthru
          _
        %p751 = scmp.eq.s32.totalorder %s32, 0
        // Predicated region
        $region61: #{tpu_custom_call.1} parent=39 // pred_check
          %p752 = pneg %p751
        $region62: #{tpu_custom_call.1} parent=39 // pred_check_branch
          %754 = sbr.rel (%p752) target = $region64
        $region63: #{tpu_custom_call.1} parent=39 // pred_region
          %v755 = vld [vmem:[#allocation2] sm:$0xff]
          %v756 = vld [vmem:[#allocation3] sm:$0xff]
          %v757 = vld [vmem:[#allocation3 + $0x8] sm:$0xff]
          %v758 = vld [vmem:[#allocation3 + $0x10] sm:$0xff]
          %759 = vmatprep.subr.mxu0 %v727
          %760 = vmatpush1.msra.mxu0 %v726
          %761 = vmatprep.subr.mxu0 %v724
          %762 = vmatpush1.msra.mxu0 %v723
          %763 = vmatprep.subr.mxu0 %v721
          %764 = vmatpush1.msra.mxu0 %v720
          %765 = vmatprep.subr.mxu0 %v718
          %766 = vmatpush1.msra.mxu0 %v717
          %767 = vmatprep.subr.mxu0 %v715
          %768 = vmatpush1.msra.mxu0 %v714
          %769 = vmatprep.subr.mxu0 %v712
          %770 = vmatpush1.msra.mxu0 %v711
          %771 = vmatprep.subr.mxu0 %v709
          %772 = vmatpush1.msra.mxu0 %v708
          %773 = vmatprep.subr.mxu0 %v706
          %774 = vmatpush1.msra.mxu0 %v705
          %775 = vmatprep.subr.mxu0 %v703
          %776 = vmatpush1.msra.mxu0 %v702
          %777 = vmatprep.subr.mxu0 %v700
          %778 = vmatpush1.msra.mxu0 %v699
          %779 = vmatprep.subr.mxu0 %v697
          %780 = vmatpush1.msra.mxu0 %v696
          %781 = vmatprep.subr.mxu0 %v694
          %782 = vmatpush1.msra.mxu0 %v693
          %783 = vmatprep.subr.mxu0 %v691
          %784 = vmatpush1.msra.mxu0 %v690
          %785 = vmatprep.subr.mxu0 %v688
          %786 = vmatpush1.msra.mxu0 %v687
          %787 = vmatprep.subr.mxu0 %v685
          %788 = vmatpush1.msra.mxu0 %v684
          %789 = vmatprep.subr.mxu0 %v682
          %790 = vmatpush1.msra.mxu0 %v681
          %791 = vmatprep.subr.mxu0 0.0
          %792 = vmatpush2.msra.mxu0 0.0
          %793 = vmatprep.subr.mxu0 0.0
          %794 = vmatpush2.msra.mxu0 0.0
          %795 = vmatprep.subr.mxu0 0.0
          %796 = vmatpush2.msra.mxu0 0.0
          %797 = vmatprep.subr.mxu0 0.0
          %798 = vmatpush2.msra.mxu0 0.0
          %799 = vmatprep.subr.mxu0 0.0
          %800 = vmatpush2.msra.mxu0 0.0
          %801 = vmatprep.subr.mxu0 0.0
          %802 = vmatpush2.msra.mxu0 0.0
          %803 = vmatprep.subr.mxu0 0.0
          %804 = vmatpush2.msra.mxu0 0.0
          %805 = vmatprep.subr.mxu0 0.0
          %806 = vmatpush2.msra.mxu0 0.0
          %807 = vmatprep.subr.mxu0 0.0
          %808 = vmatpush2.msra.mxu0 0.0
          %809 = vmatprep.subr.mxu0 0.0
          %810 = vmatpush2.msra.mxu0 0.0
          %811 = vmatprep.subr.mxu0 0.0
          %812 = vmatpush2.msra.mxu0 0.0
          %813 = vmatprep.subr.mxu0 0.0
          %814 = vmatpush2.msra.mxu0 0.0
          %815 = vmatprep.subr.mxu0 0.0
          %816 = vmatpush2.msra.mxu0 0.0
          %817 = vmatprep.subr.mxu0 0.0
          %818 = vmatpush2.msra.mxu0 0.0
          %819 = vmatprep.subr.mxu0 0.0
          %820 = vmatpush2.msra.mxu0 0.0
          %821 = vmatprep.subr.mxu0 0.0
          %822 = vmatpush2.msra.mxu0 0.0
          %823 = vmatprep.mubr.f32.mxu0 0.0
          %824 = vmatmul.mubr.f32.gmra.mxu0 %v755
          %v825 = vpop.f32.mrf.mxu0
          %v826 = vadd.f32 %v734, %v825
          %v827 = vpop.f32.mrf.mxu0
          %v828 = vadd.f32 %v738, %v827
          %829 = vdwg.mxu0
          %830 = vmatprep.subr.mxu0 0.0
          %831 = vmatpush1.msra.mxu0 %v728
          %832 = vmatprep.subr.mxu0 0.0
          %833 = vmatpush1.msra.mxu0 %v725
          %834 = vmatprep.subr.mxu0 0.0
          %835 = vmatpush1.msra.mxu0 %v722
          %836 = vmatprep.subr.mxu0 0.0
          %837 = vmatpush1.msra.mxu0 %v719
          %838 = vmatprep.subr.mxu0 0.0
          %839 = vmatpush1.msra.mxu0 %v716
          %840 = vmatprep.subr.mxu0 0.0
          %841 = vmatpush1.msra.mxu0 %v713
          %842 = vmatprep.subr.mxu0 0.0
          %843 = vmatpush1.msra.mxu0 %v710
          %844 = vmatprep.subr.mxu0 0.0
          %845 = vmatpush1.msra.mxu0 %v707
          %846 = vmatprep.subr.mxu0 0.0
          %847 = vmatpush1.msra.mxu0 %v704
          %848 = vmatprep.subr.mxu0 0.0
          %849 = vmatpush1.msra.mxu0 %v701
          %850 = vmatprep.subr.mxu0 0.0
          %851 = vmatpush1.msra.mxu0 %v698
          %852 = vmatprep.subr.mxu0 0.0
          %853 = vmatpush1.msra.mxu0 %v695
          %854 = vmatprep.subr.mxu0 0.0
          %855 = vmatpush1.msra.mxu0 %v692
          %856 = vmatprep.subr.mxu0 0.0
          %857 = vmatpush1.msra.mxu0 %v689
          %858 = vmatprep.subr.mxu0 0.0
          %859 = vmatpush1.msra.mxu0 %v686
          %860 = vmatprep.subr.mxu0 0.0
          %861 = vmatpush1.msra.mxu0 %v683
          %862 = vmatprep.subr.mxu0 0.0
          %863 = vmatpush2.msra.mxu0 0.0
          %864 = vmatprep.subr.mxu0 0.0
          %865 = vmatpush2.msra.mxu0 0.0
          %866 = vmatprep.subr.mxu0 0.0
          %867 = vmatpush2.msra.mxu0 0.0
          %868 = vmatprep.subr.mxu0 0.0
          %869 = vmatpush2.msra.mxu0 0.0
          %870 = vmatprep.subr.mxu0 0.0
          %871 = vmatpush2.msra.mxu0 0.0
          %872 = vmatprep.subr.mxu0 0.0
          %873 = vmatpush2.msra.mxu0 0.0
          %874 = vmatprep.subr.mxu0 0.0
          %875 = vmatpush2.msra.mxu0 0.0
          %876 = vmatprep.subr.mxu0 0.0
          %877 = vmatpush2.msra.mxu0 0.0
          %878 = vmatprep.subr.mxu0 0.0
          %879 = vmatpush2.msra.mxu0 0.0
          %880 = vmatprep.subr.mxu0 0.0
          %881 = vmatpush2.msra.mxu0 0.0
          %882 = vmatprep.subr.mxu0 0.0
          %883 = vmatpush2.msra.mxu0 0.0
          %884 = vmatprep.subr.mxu0 0.0
          %885 = vmatpush2.msra.mxu0 0.0
          %886 = vmatprep.subr.mxu0 0.0
          %887 = vmatpush2.msra.mxu0 0.0
          %888 = vmatprep.subr.mxu0 0.0
          %889 = vmatpush2.msra.mxu0 0.0
          %890 = vmatprep.subr.mxu0 0.0
          %891 = vmatpush2.msra.mxu0 0.0
          %892 = vmatprep.subr.mxu0 0.0
          %893 = vmatpush2.msra.mxu0 0.0
          %894 = vmatprep.mubr.f32.mxu0 0.0
          %895 = vmatmul.mubr.f32.gmra.mxu0 %v755
          %v896 = vpop.f32.mrf.mxu0
          %v897 = vadd.f32 %v742, %v896
          %v898 = vpop.f32.mrf.mxu0
          %899 = vdwg.mxu0
          %v900 = vadd.f32 %v756, %v826
          %v901 = vxor.u32 %v900, 2147483648
          %v902 = vmul.f32 %v901, 1.442695
          %v903 = vpow.pop %v902
          %v904 = vadd.f32 %v903, 1.0
          %v905 = vrcp.pop %v904
          %v906 = vmul.f32 1.0, %v905
          %v907 = vadd.f32 %v757, %v828
          %v908 = vxor.u32 %v907, 2147483648
          %v909 = vmul.f32 %v908, 1.442695
          %v910 = vpow.pop %v909
          %v911 = vadd.f32 %v910, 1.0
          %v912 = vrcp.pop %v911
          %v913 = vmul.f32 1.0, %v912
          %v914 = vmul.f32 %v906, %v897
          %v915 = vadd.f32 %v758, %v914
          %v916 = vtanh.pop %v915
          %v917 = vsub.f32 %v755, %v916
          %v918 = vmul.f32 %v913, %v917
          %v919 = vadd.f32 %v916, %v918
          %920 = vst [vmem:[%s409] sm:$0xff] %v919
          %s921 = scalar_lea.vmem [#allocation3], 24
          %v922 = vld [vmem:[%s921] sm:$0xff]
          %v923 = vld [vmem:[%s921 + $0x8] sm:$0xff]
          %v924 = vld [vmem:[%s921 + $0x10] sm:$0xff]
          %925 = vmatprep.subr.mxu0 %v727
          %926 = vmatpush1.msra.mxu0 %v726
          %927 = vmatprep.subr.mxu0 %v724
          %928 = vmatpush1.msra.mxu0 %v723
          %929 = vmatprep.subr.mxu0 %v721
          %930 = vmatpush1.msra.mxu0 %v720
          %931 = vmatprep.subr.mxu0 %v718
          %932 = vmatpush1.msra.mxu0 %v717
          %933 = vmatprep.subr.mxu0 %v715
          %934 = vmatpush1.msra.mxu0 %v714
          %935 = vmatprep.subr.mxu0 %v712
          %936 = vmatpush1.msra.mxu0 %v711
          %937 = vmatprep.subr.mxu0 %v709
          %938 = vmatpush1.msra.mxu0 %v708
          %939 = vmatprep.subr.mxu0 %v706
          %940 = vmatpush1.msra.mxu0 %v705
          %941 = vmatprep.subr.mxu0 %v703
          %942 = vmatpush1.msra.mxu0 %v702
          %943 = vmatprep.subr.mxu0 %v700
          %944 = vmatpush1.msra.mxu0 %v699
          %945 = vmatprep.subr.mxu0 %v697
          %946 = vmatpush1.msra.mxu0 %v696
          %947 = vmatprep.subr.mxu0 %v694
          %948 = vmatpush1.msra.mxu0 %v693
          %949 = vmatprep.subr.mxu0 %v691
          %950 = vmatpush1.msra.mxu0 %v690
          %951 = vmatprep.subr.mxu0 %v688
          %952 = vmatpush1.msra.mxu0 %v687
          %953 = vmatprep.subr.mxu0 %v685
          %954 = vmatpush1.msra.mxu0 %v684
          %955 = vmatprep.subr.mxu0 %v682
          %956 = vmatpush1.msra.mxu0 %v681
          %957 = vmatprep.subr.mxu0 0.0
          %958 = vmatpush2.msra.mxu0 0.0
          %959 = vmatprep.subr.mxu0 0.0
          %960 = vmatpush2.msra.mxu0 0.0
          %961 = vmatprep.subr.mxu0 0.0
          %962 = vmatpush2.msra.mxu0 0.0
          %963 = vmatprep.subr.mxu0 0.0
          %964 = vmatpush2.msra.mxu0 0.0
          %965 = vmatprep.subr.mxu0 0.0
          %966 = vmatpush2.msra.mxu0 0.0
          %967 = vmatprep.subr.mxu0 0.0
          %968 = vmatpush2.msra.mxu0 0.0
          %969 = vmatprep.subr.mxu0 0.0
          %970 = vmatpush2.msra.mxu0 0.0
          %971 = vmatprep.subr.mxu0 0.0
          %972 = vmatpush2.msra.mxu0 0.0
          %973 = vmatprep.subr.mxu0 0.0
          %974 = vmatpush2.msra.mxu0 0.0
          %975 = vmatprep.subr.mxu0 0.0
          %976 = vmatpush2.msra.mxu0 0.0
          %977 = vmatprep.subr.mxu0 0.0
          %978 = vmatpush2.msra.mxu0 0.0
          %979 = vmatprep.subr.mxu0 0.0
          %980 = vmatpush2.msra.mxu0 0.0
          %981 = vmatprep.subr.mxu0 0.0
          %982 = vmatpush2.msra.mxu0 0.0
          %983 = vmatprep.subr.mxu0 0.0
          %984 = vmatpush2.msra.mxu0 0.0
          %985 = vmatprep.subr.mxu0 0.0
          %986 = vmatpush2.msra.mxu0 0.0
          %987 = vmatprep.subr.mxu0 0.0
          %988 = vmatpush2.msra.mxu0 0.0
          %989 = vmatprep.mubr.f32.mxu0 0.0
          %990 = vmatmul.mubr.f32.gmra.mxu0 %v919
          %v991 = vpop.f32.mrf.mxu0
          %v992 = vadd.f32 %v734, %v991
          %v993 = vpop.f32.mrf.mxu0
          %v994 = vadd.f32 %v738, %v993
          %995 = vdwg.mxu0
          %996 = vmatprep.subr.mxu0 0.0
          %997 = vmatpush1.msra.mxu0 %v728
          %998 = vmatprep.subr.mxu0 0.0
          %999 = vmatpush1.msra.mxu0 %v725
          %1000 = vmatprep.subr.mxu0 0.0
          %1001 = vmatpush1.msra.mxu0 %v722
          %1002 = vmatprep.subr.mxu0 0.0
          %1003 = vmatpush1.msra.mxu0 %v719
          %1004 = vmatprep.subr.mxu0 0.0
          %1005 = vmatpush1.msra.mxu0 %v716
          %1006 = vmatprep.subr.mxu0 0.0
          %1007 = vmatpush1.msra.mxu0 %v713
          %1008 = vmatprep.subr.mxu0 0.0
          %1009 = vmatpush1.msra.mxu0 %v710
          %1010 = vmatprep.subr.mxu0 0.0
          %1011 = vmatpush1.msra.mxu0 %v707
          %1012 = vmatprep.subr.mxu0 0.0
          %1013 = vmatpush1.msra.mxu0 %v704
          %1014 = vmatprep.subr.mxu0 0.0
          %1015 = vmatpush1.msra.mxu0 %v701
          %1016 = vmatprep.subr.mxu0 0.0
          %1017 = vmatpush1.msra.mxu0 %v698
          %1018 = vmatprep.subr.mxu0 0.0
          %1019 = vmatpush1.msra.mxu0 %v695
          %1020 = vmatprep.subr.mxu0 0.0
          %1021 = vmatpush1.msra.mxu0 %v692
          %1022 = vmatprep.subr.mxu0 0.0
          %1023 = vmatpush1.msra.mxu0 %v689
          %1024 = vmatprep.subr.mxu0 0.0
          %1025 = vmatpush1.msra.mxu0 %v686
          %1026 = vmatprep.subr.mxu0 0.0
          %1027 = vmatpush1.msra.mxu0 %v683
          %1028 = vmatprep.subr.mxu0 0.0
          %1029 = vmatpush2.msra.mxu0 0.0
          %1030 = vmatprep.subr.mxu0 0.0
          %1031 = vmatpush2.msra.mxu0 0.0
          %1032 = vmatprep.subr.mxu0 0.0
          %1033 = vmatpush2.msra.mxu0 0.0
          %1034 = vmatprep.subr.mxu0 0.0
          %1035 = vmatpush2.msra.mxu0 0.0
          %1036 = vmatprep.subr.mxu0 0.0
          %1037 = vmatpush2.msra.mxu0 0.0
          %1038 = vmatprep.subr.mxu0 0.0
          %1039 = vmatpush2.msra.mxu0 0.0
          %1040 = vmatprep.subr.mxu0 0.0
          %1041 = vmatpush2.msra.mxu0 0.0
          %1042 = vmatprep.subr.mxu0 0.0
          %1043 = vmatpush2.msra.mxu0 0.0
          %1044 = vmatprep.subr.mxu0 0.0
          %1045 = vmatpush2.msra.mxu0 0.0
          %1046 = vmatprep.subr.mxu0 0.0
          %1047 = vmatpush2.msra.mxu0 0.0
          %1048 = vmatprep.subr.mxu0 0.0
          %1049 = vmatpush2.msra.mxu0 0.0
          %1050 = vmatprep.subr.mxu0 0.0
          %1051 = vmatpush2.msra.mxu0 0.0
          %1052 = vmatprep.subr.mxu0 0.0
          %1053 = vmatpush2.msra.mxu0 0.0
          %1054 = vmatprep.subr.mxu0 0.0
          %1055 = vmatpush2.msra.mxu0 0.0
          %1056 = vmatprep.subr.mxu0 0.0
          %1057 = vmatpush2.msra.mxu0 0.0
          %1058 = vmatprep.subr.mxu0 0.0
          %1059 = vmatpush2.msra.mxu0 0.0
          %1060 = vmatprep.mubr.f32.mxu0 0.0
          %1061 = vmatmul.mubr.f32.gmra.mxu0 %v919
          %v1062 = vpop.f32.mrf.mxu0
          %v1063 = vadd.f32 %v742, %v1062
          %v1064 = vpop.f32.mrf.mxu0
          %1065 = vdwg.mxu0
          %v1066 = vadd.f32 %v922, %v992
          %v1067 = vxor.u32 %v1066, 2147483648
          %v1068 = vmul.f32 %v1067, 1.442695
          %v1069 = vpow.pop %v1068
          %v1070 = vadd.f32 %v1069, 1.0
          %v1071 = vrcp.pop %v1070
          %v1072 = vmul.f32 1.0, %v1071
          %v1073 = vadd.f32 %v923, %v994
          %v1074 = vxor.u32 %v1073, 2147483648
          %v1075 = vmul.f32 %v1074, 1.442695
          %v1076 = vpow.pop %v1075
          %v1077 = vadd.f32 %v1076, 1.0
          %v1078 = vrcp.pop %v1077
          %v1079 = vmul.f32 1.0, %v1078
          %v1080 = vmul.f32 %v1072, %v1063
          %v1081 = vadd.f32 %v924, %v1080
          %v1082 = vtanh.pop %v1081
          %v1083 = vsub.f32 %v919, %v1082
          %v1084 = vmul.f32 %v1079, %v1083
          %v1085 = vadd.f32 %v1082, %v1084
          %s1086 = scalar_lea.vmem %s409, 8 [#allocation12]
          %1087 = vst [vmem:[%s1086] sm:$0xff] %v1085
          %s1088 = scalar_lea.vmem [#allocation3], 48
          %v1089 = vld [vmem:[%s1088] sm:$0xff]
          %v1090 = vld [vmem:[%s1088 + $0x8] sm:$0xff]
          %v1091 = vld [vmem:[%s1088 + $0x10] sm:$0xff]
          %1092 = vmatprep.subr.mxu0 %v727
          %1093 = vmatpush1.msra.mxu0 %v726
          %1094 = vmatprep.subr.mxu0 %v724
          %1095 = vmatpush1.msra.mxu0 %v723
          %1096 = vmatprep.subr.mxu0 %v721
          %1097 = vmatpush1.msra.mxu0 %v720
          %1098 = vmatprep.subr.mxu0 %v718
          %1099 = vmatpush1.msra.mxu0 %v717
          %1100 = vmatprep.subr.mxu0 %v715
          %1101 = vmatpush1.msra.mxu0 %v714
          %1102 = vmatprep.subr.mxu0 %v712
          %1103 = vmatpush1.msra.mxu0 %v711
          %1104 = vmatprep.subr.mxu0 %v709
          %1105 = vmatpush1.msra.mxu0 %v708
          %1106 = vmatprep.subr.mxu0 %v706
          %1107 = vmatpush1.msra.mxu0 %v705
          %1108 = vmatprep.subr.mxu0 %v703
          %1109 = vmatpush1.msra.mxu0 %v702
          %1110 = vmatprep.subr.mxu0 %v700
          %1111 = vmatpush1.msra.mxu0 %v699
          %1112 = vmatprep.subr.mxu0 %v697
          %1113 = vmatpush1.msra.mxu0 %v696
          %1114 = vmatprep.subr.mxu0 %v694
          %1115 = vmatpush1.msra.mxu0 %v693
          %1116 = vmatprep.subr.mxu0 %v691
          %1117 = vmatpush1.msra.mxu0 %v690
          %1118 = vmatprep.subr.mxu0 %v688
          %1119 = vmatpush1.msra.mxu0 %v687
          %1120 = vmatprep.subr.mxu0 %v685
          %1121 = vmatpush1.msra.mxu0 %v684
          %1122 = vmatprep.subr.mxu0 %v682
          %1123 = vmatpush1.msra.mxu0 %v681
          %1124 = vmatprep.subr.mxu0 0.0
          %1125 = vmatpush2.msra.mxu0 0.0
          %1126 = vmatprep.subr.mxu0 0.0
          %1127 = vmatpush2.msra.mxu0 0.0
          %1128 = vmatprep.subr.mxu0 0.0
          %1129 = vmatpush2.msra.mxu0 0.0
          %1130 = vmatprep.subr.mxu0 0.0
          %1131 = vmatpush2.msra.mxu0 0.0
          %1132 = vmatprep.subr.mxu0 0.0
          %1133 = vmatpush2.msra.mxu0 0.0
          %1134 = vmatprep.subr.mxu0 0.0
          %1135 = vmatpush2.msra.mxu0 0.0
          %1136 = vmatprep.subr.mxu0 0.0
          %1137 = vmatpush2.msra.mxu0 0.0
          %1138 = vmatprep.subr.mxu0 0.0
          %1139 = vmatpush2.msra.mxu0 0.0
          %1140 = vmatprep.subr.mxu0 0.0
          %1141 = vmatpush2.msra.mxu0 0.0
          %1142 = vmatprep.subr.mxu0 0.0
          %1143 = vmatpush2.msra.mxu0 0.0
          %1144 = vmatprep.subr.mxu0 0.0
          %1145 = vmatpush2.msra.mxu0 0.0
          %1146 = vmatprep.subr.mxu0 0.0
          %1147 = vmatpush2.msra.mxu0 0.0
          %1148 = vmatprep.subr.mxu0 0.0
          %1149 = vmatpush2.msra.mxu0 0.0
          %1150 = vmatprep.subr.mxu0 0.0
          %1151 = vmatpush2.msra.mxu0 0.0
          %1152 = vmatprep.subr.mxu0 0.0
          %1153 = vmatpush2.msra.mxu0 0.0
          %1154 = vmatprep.subr.mxu0 0.0
          %1155 = vmatpush2.msra.mxu0 0.0
          %1156 = vmatprep.mubr.f32.mxu0 0.0
          %1157 = vmatmul.mubr.f32.gmra.mxu0 %v1085
          %v1158 = vpop.f32.mrf.mxu0
          %v1159 = vadd.f32 %v734, %v1158
          %v1160 = vpop.f32.mrf.mxu0
          %v1161 = vadd.f32 %v738, %v1160
          %1162 = vdwg.mxu0
          %1163 = vmatprep.subr.mxu0 0.0
          %1164 = vmatpush1.msra.mxu0 %v728
          %1165 = vmatprep.subr.mxu0 0.0
          %1166 = vmatpush1.msra.mxu0 %v725
          %1167 = vmatprep.subr.mxu0 0.0
          %1168 = vmatpush1.msra.mxu0 %v722
          %1169 = vmatprep.subr.mxu0 0.0
          %1170 = vmatpush1.msra.mxu0 %v719
          %1171 = vmatprep.subr.mxu0 0.0
          %1172 = vmatpush1.msra.mxu0 %v716
          %1173 = vmatprep.subr.mxu0 0.0
          %1174 = vmatpush1.msra.mxu0 %v713
          %1175 = vmatprep.subr.mxu0 0.0
          %1176 = vmatpush1.msra.mxu0 %v710
          %1177 = vmatprep.subr.mxu0 0.0
          %1178 = vmatpush1.msra.mxu0 %v707
          %1179 = vmatprep.subr.mxu0 0.0
          %1180 = vmatpush1.msra.mxu0 %v704
          %1181 = vmatprep.subr.mxu0 0.0
          %1182 = vmatpush1.msra.mxu0 %v701
          %1183 = vmatprep.subr.mxu0 0.0
          %1184 = vmatpush1.msra.mxu0 %v698
          %1185 = vmatprep.subr.mxu0 0.0
          %1186 = vmatpush1.msra.mxu0 %v695
          %1187 = vmatprep.subr.mxu0 0.0
          %1188 = vmatpush1.msra.mxu0 %v692
          %1189 = vmatprep.subr.mxu0 0.0
          %1190 = vmatpush1.msra.mxu0 %v689
          %1191 = vmatprep.subr.mxu0 0.0
          %1192 = vmatpush1.msra.mxu0 %v686
          %1193 = vmatprep.subr.mxu0 0.0
          %1194 = vmatpush1.msra.mxu0 %v683
          %1195 = vmatprep.subr.mxu0 0.0
          %1196 = vmatpush2.msra.mxu0 0.0
          %1197 = vmatprep.subr.mxu0 0.0
          %1198 = vmatpush2.msra.mxu0 0.0
          %1199 = vmatprep.subr.mxu0 0.0
          %1200 = vmatpush2.msra.mxu0 0.0
          %1201 = vmatprep.subr.mxu0 0.0
          %1202 = vmatpush2.msra.mxu0 0.0
          %1203 = vmatprep.subr.mxu0 0.0
          %1204 = vmatpush2.msra.mxu0 0.0
          %1205 = vmatprep.subr.mxu0 0.0
          %1206 = vmatpush2.msra.mxu0 0.0
          %1207 = vmatprep.subr.mxu0 0.0
          %1208 = vmatpush2.msra.mxu0 0.0
          %1209 = vmatprep.subr.mxu0 0.0
          %1210 = vmatpush2.msra.mxu0 0.0
          %1211 = vmatprep.subr.mxu0 0.0
          %1212 = vmatpush2.msra.mxu0 0.0
          %1213 = vmatprep.subr.mxu0 0.0
          %1214 = vmatpush2.msra.mxu0 0.0
          %1215 = vmatprep.subr.mxu0 0.0
          %1216 = vmatpush2.msra.mxu0 0.0
          %1217 = vmatprep.subr.mxu0 0.0
          %1218 = vmatpush2.msra.mxu0 0.0
          %1219 = vmatprep.subr.mxu0 0.0
          %1220 = vmatpush2.msra.mxu0 0.0
          %1221 = vmatprep.subr.mxu0 0.0
          %1222 = vmatpush2.msra.mxu0 0.0
          %1223 = vmatprep.subr.mxu0 0.0
          %1224 = vmatpush2.msra.mxu0 0.0
          %1225 = vmatprep.subr.mxu0 0.0
          %1226 = vmatpush2.msra.mxu0 0.0
          %1227 = vmatprep.mubr.f32.mxu0 0.0
          %1228 = vmatmul.mubr.f32.gmra.mxu0 %v1085
          %v1229 = vpop.f32.mrf.mxu0
          %v1230 = vadd.f32 %v742, %v1229
          %v1231 = vpop.f32.mrf.mxu0
          %1232 = vdwg.mxu0
          %v1233 = vadd.f32 %v1089, %v1159
          %v1234 = vxor.u32 %v1233, 2147483648
          %v1235 = vmul.f32 %v1234, 1.442695
          %v1236 = vpow.pop %v1235
          %v1237 = vadd.f32 %v1236, 1.0
          %v1238 = vrcp.pop %v1237
          %v1239 = vmul.f32 1.0, %v1238
          %v1240 = vadd.f32 %v1090, %v1161
          %v1241 = vxor.u32 %v1240, 2147483648
          %v1242 = vmul.f32 %v1241, 1.442695
          %v1243 = vpow.pop %v1242
          %v1244 = vadd.f32 %v1243, 1.0
          %v1245 = vrcp.pop %v1244
          %v1246 = vmul.f32 1.0, %v1245
          %v1247 = vmul.f32 %v1239, %v1230
          %v1248 = vadd.f32 %v1091, %v1247
          %v1249 = vtanh.pop %v1248
          %v1250 = vsub.f32 %v1085, %v1249
          %v1251 = vmul.f32 %v1246, %v1250
          %v1252 = vadd.f32 %v1249, %v1251
          %s1253 = scalar_lea.vmem %s409, 16 [#allocation12]
          %1254 = vst [vmem:[%s1253] sm:$0xff] %v1252
          %s1255 = scalar_lea.vmem [#allocation3], 72
          %v1256 = vld [vmem:[%s1255] sm:$0xff]
          %v1257 = vld [vmem:[%s1255 + $0x8] sm:$0xff]
          %v1258 = vld [vmem:[%s1255 + $0x10] sm:$0xff]
          %1259 = vmatprep.subr.mxu0 %v727
          %1260 = vmatpush1.msra.mxu0 %v726
          %1261 = vmatprep.subr.mxu0 %v724
          %1262 = vmatpush1.msra.mxu0 %v723
          %1263 = vmatprep.subr.mxu0 %v721
          %1264 = vmatpush1.msra.mxu0 %v720
          %1265 = vmatprep.subr.mxu0 %v718
          %1266 = vmatpush1.msra.mxu0 %v717
          %1267 = vmatprep.subr.mxu0 %v715
          %1268 = vmatpush1.msra.mxu0 %v714
          %1269 = vmatprep.subr.mxu0 %v712
          %1270 = vmatpush1.msra.mxu0 %v711
          %1271 = vmatprep.subr.mxu0 %v709
          %1272 = vmatpush1.msra.mxu0 %v708
          %1273 = vmatprep.subr.mxu0 %v706
          %1274 = vmatpush1.msra.mxu0 %v705
          %1275 = vmatprep.subr.mxu0 %v703
          %1276 = vmatpush1.msra.mxu0 %v702
          %1277 = vmatprep.subr.mxu0 %v700
          %1278 = vmatpush1.msra.mxu0 %v699
          %1279 = vmatprep.subr.mxu0 %v697
          %1280 = vmatpush1.msra.mxu0 %v696
          %1281 = vmatprep.subr.mxu0 %v694
          %1282 = vmatpush1.msra.mxu0 %v693
          %1283 = vmatprep.subr.mxu0 %v691
          %1284 = vmatpush1.msra.mxu0 %v690
          %1285 = vmatprep.subr.mxu0 %v688
          %1286 = vmatpush1.msra.mxu0 %v687
          %1287 = vmatprep.subr.mxu0 %v685
          %1288 = vmatpush1.msra.mxu0 %v684
          %1289 = vmatprep.subr.mxu0 %v682
          %1290 = vmatpush1.msra.mxu0 %v681
          %1291 = vmatprep.subr.mxu0 0.0
          %1292 = vmatpush2.msra.mxu0 0.0
          %1293 = vmatprep.subr.mxu0 0.0
          %1294 = vmatpush2.msra.mxu0 0.0
          %1295 = vmatprep.subr.mxu0 0.0
          %1296 = vmatpush2.msra.mxu0 0.0
          %1297 = vmatprep.subr.mxu0 0.0
          %1298 = vmatpush2.msra.mxu0 0.0
          %1299 = vmatprep.subr.mxu0 0.0
          %1300 = vmatpush2.msra.mxu0 0.0
          %1301 = vmatprep.subr.mxu0 0.0
          %1302 = vmatpush2.msra.mxu0 0.0
          %1303 = vmatprep.subr.mxu0 0.0
          %1304 = vmatpush2.msra.mxu0 0.0
          %1305 = vmatprep.subr.mxu0 0.0
          %1306 = vmatpush2.msra.mxu0 0.0
          %1307 = vmatprep.subr.mxu0 0.0
          %1308 = vmatpush2.msra.mxu0 0.0
          %1309 = vmatprep.subr.mxu0 0.0
          %1310 = vmatpush2.msra.mxu0 0.0
          %1311 = vmatprep.subr.mxu0 0.0
          %1312 = vmatpush2.msra.mxu0 0.0
          %1313 = vmatprep.subr.mxu0 0.0
          %1314 = vmatpush2.msra.mxu0 0.0
          %1315 = vmatprep.subr.mxu0 0.0
          %1316 = vmatpush2.msra.mxu0 0.0
          %1317 = vmatprep.subr.mxu0 0.0
          %1318 = vmatpush2.msra.mxu0 0.0
          %1319 = vmatprep.subr.mxu0 0.0
          %1320 = vmatpush2.msra.mxu0 0.0
          %1321 = vmatprep.subr.mxu0 0.0
          %1322 = vmatpush2.msra.mxu0 0.0
          %1323 = vmatprep.mubr.f32.mxu0 0.0
          %1324 = vmatmul.mubr.f32.gmra.mxu0 %v1252
          %v1325 = vpop.f32.mrf.mxu0
          %v1326 = vadd.f32 %v734, %v1325
          %v1327 = vpop.f32.mrf.mxu0
          %v1328 = vadd.f32 %v738, %v1327
          %1329 = vdwg.mxu0
          %1330 = vmatprep.subr.mxu0 0.0
          %1331 = vmatpush1.msra.mxu0 %v728
          %1332 = vmatprep.subr.mxu0 0.0
          %1333 = vmatpush1.msra.mxu0 %v725
          %1334 = vmatprep.subr.mxu0 0.0
          %1335 = vmatpush1.msra.mxu0 %v722
          %1336 = vmatprep.subr.mxu0 0.0
          %1337 = vmatpush1.msra.mxu0 %v719
          %1338 = vmatprep.subr.mxu0 0.0
          %1339 = vmatpush1.msra.mxu0 %v716
          %1340 = vmatprep.subr.mxu0 0.0
          %1341 = vmatpush1.msra.mxu0 %v713
          %1342 = vmatprep.subr.mxu0 0.0
          %1343 = vmatpush1.msra.mxu0 %v710
          %1344 = vmatprep.subr.mxu0 0.0
          %1345 = vmatpush1.msra.mxu0 %v707
          %1346 = vmatprep.subr.mxu0 0.0
          %1347 = vmatpush1.msra.mxu0 %v704
          %1348 = vmatprep.subr.mxu0 0.0
          %1349 = vmatpush1.msra.mxu0 %v701
          %1350 = vmatprep.subr.mxu0 0.0
          %1351 = vmatpush1.msra.mxu0 %v698
          %1352 = vmatprep.subr.mxu0 0.0
          %1353 = vmatpush1.msra.mxu0 %v695
          %1354 = vmatprep.subr.mxu0 0.0
          %1355 = vmatpush1.msra.mxu0 %v692
          %1356 = vmatprep.subr.mxu0 0.0
          %1357 = vmatpush1.msra.mxu0 %v689
          %1358 = vmatprep.subr.mxu0 0.0
          %1359 = vmatpush1.msra.mxu0 %v686
          %1360 = vmatprep.subr.mxu0 0.0
          %1361 = vmatpush1.msra.mxu0 %v683
          %1362 = vmatprep.subr.mxu0 0.0
          %1363 = vmatpush2.msra.mxu0 0.0
          %1364 = vmatprep.subr.mxu0 0.0
          %1365 = vmatpush2.msra.mxu0 0.0
          %1366 = vmatprep.subr.mxu0 0.0
          %1367 = vmatpush2.msra.mxu0 0.0
          %1368 = vmatprep.subr.mxu0 0.0
          %1369 = vmatpush2.msra.mxu0 0.0
          %1370 = vmatprep.subr.mxu0 0.0
          %1371 = vmatpush2.msra.mxu0 0.0
          %1372 = vmatprep.subr.mxu0 0.0
          %1373 = vmatpush2.msra.mxu0 0.0
          %1374 = vmatprep.subr.mxu0 0.0
          %1375 = vmatpush2.msra.mxu0 0.0
          %1376 = vmatprep.subr.mxu0 0.0
          %1377 = vmatpush2.msra.mxu0 0.0
          %1378 = vmatprep.subr.mxu0 0.0
          %1379 = vmatpush2.msra.mxu0 0.0
          %1380 = vmatprep.subr.mxu0 0.0
          %1381 = vmatpush2.msra.mxu0 0.0
          %1382 = vmatprep.subr.mxu0 0.0
          %1383 = vmatpush2.msra.mxu0 0.0
          %1384 = vmatprep.subr.mxu0 0.0
          %1385 = vmatpush2.msra.mxu0 0.0
          %1386 = vmatprep.subr.mxu0 0.0
          %1387 = vmatpush2.msra.mxu0 0.0
          %1388 = vmatprep.subr.mxu0 0.0
          %1389 = vmatpush2.msra.mxu0 0.0
          %1390 = vmatprep.subr.mxu0 0.0
          %1391 = vmatpush2.msra.mxu0 0.0
          %1392 = vmatprep.subr.mxu0 0.0
          %1393 = vmatpush2.msra.mxu0 0.0
          %1394 = vmatprep.mubr.f32.mxu0 0.0
          %1395 = vmatmul.mubr.f32.gmra.mxu0 %v1252
          %v1396 = vpop.f32.mrf.mxu0
          %v1397 = vadd.f32 %v742, %v1396
          %v1398 = vpop.f32.mrf.mxu0
          %1399 = vdwg.mxu0
          %v1400 = vadd.f32 %v1256, %v1326
          %v1401 = vxor.u32 %v1400, 2147483648
          %v1402 = vmul.f32 %v1401, 1.442695
          %v1403 = vpow.pop %v1402
          %v1404 = vadd.f32 %v1403, 1.0
          %v1405 = vrcp.pop %v1404
          %v1406 = vmul.f32 1.0, %v1405
          %v1407 = vadd.f32 %v1257, %v1328
          %v1408 = vxor.u32 %v1407, 2147483648
          %v1409 = vmul.f32 %v1408, 1.442695
          %v1410 = vpow.pop %v1409
          %v1411 = vadd.f32 %v1410, 1.0
          %v1412 = vrcp.pop %v1411
          %v1413 = vmul.f32 1.0, %v1412
          %v1414 = vmul.f32 %v1406, %v1397
          %v1415 = vadd.f32 %v1258, %v1414
          %v1416 = vtanh.pop %v1415
          %v1417 = vsub.f32 %v1252, %v1416
          %v1418 = vmul.f32 %v1413, %v1417
          %v1419 = vadd.f32 %v1416, %v1418
          %s1420 = scalar_lea.vmem %s409, 24 [#allocation12]
          %1421 = vst [vmem:[%s1420] sm:$0xff] %v1419
          %1422 = vst [vmem:[#allocation2] sm:$0xff] %v1419
        $region64: #{tpu_custom_call.1} parent=39 // pred_fallthru
          _
        %p1423 = scmp.eq.s32.totalorder %s32, 1
        // Predicated region
        $region65: #{tpu_custom_call.1} parent=39 // pred_check
          %p1424 = pneg %p1423
        $region66: #{tpu_custom_call.1} parent=39 // pred_check_branch
          %1426 = sbr.rel (%p1424) target = $region68
        $region67: #{tpu_custom_call.1} parent=39 // pred_region
          %v1427 = vld [vmem:[#allocation2] sm:$0xff]
          %s1428 = scalar_lea.vmem [#allocation3], 72
          %v1429 = vld [vmem:[%s1428] sm:$0xff]
          %v1430 = vld [vmem:[%s1428 + $0x8] sm:$0xff]
          %v1431 = vld [vmem:[%s1428 + $0x10] sm:$0xff]
          %1432 = vmatprep.subr.mxu0 %v727
          %1433 = vmatpush1.msra.mxu0 %v726
          %1434 = vmatprep.subr.mxu0 %v724
          %1435 = vmatpush1.msra.mxu0 %v723
          %1436 = vmatprep.subr.mxu0 %v721
          %1437 = vmatpush1.msra.mxu0 %v720
          %1438 = vmatprep.subr.mxu0 %v718
          %1439 = vmatpush1.msra.mxu0 %v717
          %1440 = vmatprep.subr.mxu0 %v715
          %1441 = vmatpush1.msra.mxu0 %v714
          %1442 = vmatprep.subr.mxu0 %v712
          %1443 = vmatpush1.msra.mxu0 %v711
          %1444 = vmatprep.subr.mxu0 %v709
          %1445 = vmatpush1.msra.mxu0 %v708
          %1446 = vmatprep.subr.mxu0 %v706
          %1447 = vmatpush1.msra.mxu0 %v705
          %1448 = vmatprep.subr.mxu0 %v703
          %1449 = vmatpush1.msra.mxu0 %v702
          %1450 = vmatprep.subr.mxu0 %v700
          %1451 = vmatpush1.msra.mxu0 %v699
          %1452 = vmatprep.subr.mxu0 %v697
          %1453 = vmatpush1.msra.mxu0 %v696
          %1454 = vmatprep.subr.mxu0 %v694
          %1455 = vmatpush1.msra.mxu0 %v693
          %1456 = vmatprep.subr.mxu0 %v691
          %1457 = vmatpush1.msra.mxu0 %v690
          %1458 = vmatprep.subr.mxu0 %v688
          %1459 = vmatpush1.msra.mxu0 %v687
          %1460 = vmatprep.subr.mxu0 %v685
          %1461 = vmatpush1.msra.mxu0 %v684
          %1462 = vmatprep.subr.mxu0 %v682
          %1463 = vmatpush1.msra.mxu0 %v681
          %1464 = vmatprep.subr.mxu0 0.0
          %1465 = vmatpush2.msra.mxu0 0.0
          %1466 = vmatprep.subr.mxu0 0.0
          %1467 = vmatpush2.msra.mxu0 0.0
          %1468 = vmatprep.subr.mxu0 0.0
          %1469 = vmatpush2.msra.mxu0 0.0
          %1470 = vmatprep.subr.mxu0 0.0
          %1471 = vmatpush2.msra.mxu0 0.0
          %1472 = vmatprep.subr.mxu0 0.0
          %1473 = vmatpush2.msra.mxu0 0.0
          %1474 = vmatprep.subr.mxu0 0.0
          %1475 = vmatpush2.msra.mxu0 0.0
          %1476 = vmatprep.subr.mxu0 0.0
          %1477 = vmatpush2.msra.mxu0 0.0
          %1478 = vmatprep.subr.mxu0 0.0
          %1479 = vmatpush2.msra.mxu0 0.0
          %1480 = vmatprep.subr.mxu0 0.0
          %1481 = vmatpush2.msra.mxu0 0.0
          %1482 = vmatprep.subr.mxu0 0.0
          %1483 = vmatpush2.msra.mxu0 0.0
          %1484 = vmatprep.subr.mxu0 0.0
          %1485 = vmatpush2.msra.mxu0 0.0
          %1486 = vmatprep.subr.mxu0 0.0
          %1487 = vmatpush2.msra.mxu0 0.0
          %1488 = vmatprep.subr.mxu0 0.0
          %1489 = vmatpush2.msra.mxu0 0.0
          %1490 = vmatprep.subr.mxu0 0.0
          %1491 = vmatpush2.msra.mxu0 0.0
          %1492 = vmatprep.subr.mxu0 0.0
          %1493 = vmatpush2.msra.mxu0 0.0
          %1494 = vmatprep.subr.mxu0 0.0
          %1495 = vmatpush2.msra.mxu0 0.0
          %1496 = vmatprep.mubr.f32.mxu0 0.0
          %1497 = vmatmul.mubr.f32.gmra.mxu0 %v1427
          %v1498 = vpop.f32.mrf.mxu0
          %v1499 = vadd.f32 %v734, %v1498
          %v1500 = vpop.f32.mrf.mxu0
          %v1501 = vadd.f32 %v738, %v1500
          %1502 = vdwg.mxu0
          %1503 = vmatprep.subr.mxu0 0.0
          %1504 = vmatpush1.msra.mxu0 %v728
          %1505 = vmatprep.subr.mxu0 0.0
          %1506 = vmatpush1.msra.mxu0 %v725
          %1507 = vmatprep.subr.mxu0 0.0
          %1508 = vmatpush1.msra.mxu0 %v722
          %1509 = vmatprep.subr.mxu0 0.0
          %1510 = vmatpush1.msra.mxu0 %v719
          %1511 = vmatprep.subr.mxu0 0.0
          %1512 = vmatpush1.msra.mxu0 %v716
          %1513 = vmatprep.subr.mxu0 0.0
          %1514 = vmatpush1.msra.mxu0 %v713
          %1515 = vmatprep.subr.mxu0 0.0
          %1516 = vmatpush1.msra.mxu0 %v710
          %1517 = vmatprep.subr.mxu0 0.0
          %1518 = vmatpush1.msra.mxu0 %v707
          %1519 = vmatprep.subr.mxu0 0.0
          %1520 = vmatpush1.msra.mxu0 %v704
          %1521 = vmatprep.subr.mxu0 0.0
          %1522 = vmatpush1.msra.mxu0 %v701
          %1523 = vmatprep.subr.mxu0 0.0
          %1524 = vmatpush1.msra.mxu0 %v698
          %1525 = vmatprep.subr.mxu0 0.0
          %1526 = vmatpush1.msra.mxu0 %v695
          %1527 = vmatprep.subr.mxu0 0.0
          %1528 = vmatpush1.msra.mxu0 %v692
          %1529 = vmatprep.subr.mxu0 0.0
          %1530 = vmatpush1.msra.mxu0 %v689
          %1531 = vmatprep.subr.mxu0 0.0
          %1532 = vmatpush1.msra.mxu0 %v686
          %1533 = vmatprep.subr.mxu0 0.0
          %1534 = vmatpush1.msra.mxu0 %v683
          %1535 = vmatprep.subr.mxu0 0.0
          %1536 = vmatpush2.msra.mxu0 0.0
          %1537 = vmatprep.subr.mxu0 0.0
          %1538 = vmatpush2.msra.mxu0 0.0
          %1539 = vmatprep.subr.mxu0 0.0
          %1540 = vmatpush2.msra.mxu0 0.0
          %1541 = vmatprep.subr.mxu0 0.0
          %1542 = vmatpush2.msra.mxu0 0.0
          %1543 = vmatprep.subr.mxu0 0.0
          %1544 = vmatpush2.msra.mxu0 0.0
          %1545 = vmatprep.subr.mxu0 0.0
          %1546 = vmatpush2.msra.mxu0 0.0
          %1547 = vmatprep.subr.mxu0 0.0
          %1548 = vmatpush2.msra.mxu0 0.0
          %1549 = vmatprep.subr.mxu0 0.0
          %1550 = vmatpush2.msra.mxu0 0.0
          %1551 = vmatprep.subr.mxu0 0.0
          %1552 = vmatpush2.msra.mxu0 0.0
          %1553 = vmatprep.subr.mxu0 0.0
          %1554 = vmatpush2.msra.mxu0 0.0
          %1555 = vmatprep.subr.mxu0 0.0
          %1556 = vmatpush2.msra.mxu0 0.0
          %1557 = vmatprep.subr.mxu0 0.0
          %1558 = vmatpush2.msra.mxu0 0.0
          %1559 = vmatprep.subr.mxu0 0.0
          %1560 = vmatpush2.msra.mxu0 0.0
          %1561 = vmatprep.subr.mxu0 0.0
          %1562 = vmatpush2.msra.mxu0 0.0
          %1563 = vmatprep.subr.mxu0 0.0
          %1564 = vmatpush2.msra.mxu0 0.0
          %1565 = vmatprep.subr.mxu0 0.0
          %1566 = vmatpush2.msra.mxu0 0.0
          %1567 = vmatprep.mubr.f32.mxu0 0.0
          %1568 = vmatmul.mubr.f32.gmra.mxu0 %v1427
          %v1569 = vpop.f32.mrf.mxu0
          %v1570 = vadd.f32 %v742, %v1569
          %v1571 = vpop.f32.mrf.mxu0
          %1572 = vdwg.mxu0
          %v1573 = vadd.f32 %v1429, %v1499
          %v1574 = vxor.u32 %v1573, 2147483648
          %v1575 = vmul.f32 %v1574, 1.442695
          %v1576 = vpow.pop %v1575
          %v1577 = vadd.f32 %v1576, 1.0
          %v1578 = vrcp.pop %v1577
          %v1579 = vmul.f32 1.0, %v1578
          %v1580 = vadd.f32 %v1430, %v1501
          %v1581 = vxor.u32 %v1580, 2147483648
          %v1582 = vmul.f32 %v1581, 1.442695
          %v1583 = vpow.pop %v1582
          %v1584 = vadd.f32 %v1583, 1.0
          %v1585 = vrcp.pop %v1584
          %v1586 = vmul.f32 1.0, %v1585
          %v1587 = vmul.f32 %v1579, %v1570
          %v1588 = vadd.f32 %v1431, %v1587
          %v1589 = vtanh.pop %v1588
          %v1590 = vsub.f32 %v1427, %v1589
          %v1591 = vmul.f32 %v1586, %v1590
          %v1592 = vadd.f32 %v1589, %v1591
          %s1593 = scalar_lea.vmem %s409, 24 [#allocation12]
          %1594 = vst [vmem:[%s1593] sm:$0xff] %v1592
          %s1595 = scalar_lea.vmem [#allocation3], 48
          %v1596 = vld [vmem:[%s1595] sm:$0xff]
          %v1597 = vld [vmem:[%s1595 + $0x8] sm:$0xff]
          %v1598 = vld [vmem:[%s1595 + $0x10] sm:$0xff]
          %1599 = vmatprep.subr.mxu0 %v727
          %1600 = vmatpush1.msra.mxu0 %v726
          %1601 = vmatprep.subr.mxu0 %v724
          %1602 = vmatpush1.msra.mxu0 %v723
          %1603 = vmatprep.subr.mxu0 %v721
          %1604 = vmatpush1.msra.mxu0 %v720
          %1605 = vmatprep.subr.mxu0 %v718
          %1606 = vmatpush1.msra.mxu0 %v717
          %1607 = vmatprep.subr.mxu0 %v715
          %1608 = vmatpush1.msra.mxu0 %v714
          %1609 = vmatprep.subr.mxu0 %v712
          %1610 = vmatpush1.msra.mxu0 %v711
          %1611 = vmatprep.subr.mxu0 %v709
          %1612 = vmatpush1.msra.mxu0 %v708
          %1613 = vmatprep.subr.mxu0 %v706
          %1614 = vmatpush1.msra.mxu0 %v705
          %1615 = vmatprep.subr.mxu0 %v703
          %1616 = vmatpush1.msra.mxu0 %v702
          %1617 = vmatprep.subr.mxu0 %v700
          %1618 = vmatpush1.msra.mxu0 %v699
          %1619 = vmatprep.subr.mxu0 %v697
          %1620 = vmatpush1.msra.mxu0 %v696
          %1621 = vmatprep.subr.mxu0 %v694
          %1622 = vmatpush1.msra.mxu0 %v693
          %1623 = vmatprep.subr.mxu0 %v691
          %1624 = vmatpush1.msra.mxu0 %v690
          %1625 = vmatprep.subr.mxu0 %v688
          %1626 = vmatpush1.msra.mxu0 %v687
          %1627 = vmatprep.subr.mxu0 %v685
          %1628 = vmatpush1.msra.mxu0 %v684
          %1629 = vmatprep.subr.mxu0 %v682
          %1630 = vmatpush1.msra.mxu0 %v681
          %1631 = vmatprep.subr.mxu0 0.0
          %1632 = vmatpush2.msra.mxu0 0.0
          %1633 = vmatprep.subr.mxu0 0.0
          %1634 = vmatpush2.msra.mxu0 0.0
          %1635 = vmatprep.subr.mxu0 0.0
          %1636 = vmatpush2.msra.mxu0 0.0
          %1637 = vmatprep.subr.mxu0 0.0
          %1638 = vmatpush2.msra.mxu0 0.0
          %1639 = vmatprep.subr.mxu0 0.0
          %1640 = vmatpush2.msra.mxu0 0.0
          %1641 = vmatprep.subr.mxu0 0.0
          %1642 = vmatpush2.msra.mxu0 0.0
          %1643 = vmatprep.subr.mxu0 0.0
          %1644 = vmatpush2.msra.mxu0 0.0
          %1645 = vmatprep.subr.mxu0 0.0
          %1646 = vmatpush2.msra.mxu0 0.0
          %1647 = vmatprep.subr.mxu0 0.0
          %1648 = vmatpush2.msra.mxu0 0.0
          %1649 = vmatprep.subr.mxu0 0.0
          %1650 = vmatpush2.msra.mxu0 0.0
          %1651 = vmatprep.subr.mxu0 0.0
          %1652 = vmatpush2.msra.mxu0 0.0
          %1653 = vmatprep.subr.mxu0 0.0
          %1654 = vmatpush2.msra.mxu0 0.0
          %1655 = vmatprep.subr.mxu0 0.0
          %1656 = vmatpush2.msra.mxu0 0.0
          %1657 = vmatprep.subr.mxu0 0.0
          %1658 = vmatpush2.msra.mxu0 0.0
          %1659 = vmatprep.subr.mxu0 0.0
          %1660 = vmatpush2.msra.mxu0 0.0
          %1661 = vmatprep.subr.mxu0 0.0
          %1662 = vmatpush2.msra.mxu0 0.0
          %1663 = vmatprep.mubr.f32.mxu0 0.0
          %1664 = vmatmul.mubr.f32.gmra.mxu0 %v1592
          %v1665 = vpop.f32.mrf.mxu0
          %v1666 = vadd.f32 %v734, %v1665
          %v1667 = vpop.f32.mrf.mxu0
          %v1668 = vadd.f32 %v738, %v1667
          %1669 = vdwg.mxu0
          %1670 = vmatprep.subr.mxu0 0.0
          %1671 = vmatpush1.msra.mxu0 %v728
          %1672 = vmatprep.subr.mxu0 0.0
          %1673 = vmatpush1.msra.mxu0 %v725
          %1674 = vmatprep.subr.mxu0 0.0
          %1675 = vmatpush1.msra.mxu0 %v722
          %1676 = vmatprep.subr.mxu0 0.0
          %1677 = vmatpush1.msra.mxu0 %v719
          %1678 = vmatprep.subr.mxu0 0.0
          %1679 = vmatpush1.msra.mxu0 %v716
          %1680 = vmatprep.subr.mxu0 0.0
          %1681 = vmatpush1.msra.mxu0 %v713
          %1682 = vmatprep.subr.mxu0 0.0
          %1683 = vmatpush1.msra.mxu0 %v710
          %1684 = vmatprep.subr.mxu0 0.0
          %1685 = vmatpush1.msra.mxu0 %v707
          %1686 = vmatprep.subr.mxu0 0.0
          %1687 = vmatpush1.msra.mxu0 %v704
          %1688 = vmatprep.subr.mxu0 0.0
          %1689 = vmatpush1.msra.mxu0 %v701
          %1690 = vmatprep.subr.mxu0 0.0
          %1691 = vmatpush1.msra.mxu0 %v698
          %1692 = vmatprep.subr.mxu0 0.0
          %1693 = vmatpush1.msra.mxu0 %v695
          %1694 = vmatprep.subr.mxu0 0.0
          %1695 = vmatpush1.msra.mxu0 %v692
          %1696 = vmatprep.subr.mxu0 0.0
          %1697 = vmatpush1.msra.mxu0 %v689
          %1698 = vmatprep.subr.mxu0 0.0
          %1699 = vmatpush1.msra.mxu0 %v686
          %1700 = vmatprep.subr.mxu0 0.0
          %1701 = vmatpush1.msra.mxu0 %v683
          %1702 = vmatprep.subr.mxu0 0.0
          %1703 = vmatpush2.msra.mxu0 0.0
          %1704 = vmatprep.subr.mxu0 0.0
          %1705 = vmatpush2.msra.mxu0 0.0
          %1706 = vmatprep.subr.mxu0 0.0
          %1707 = vmatpush2.msra.mxu0 0.0
          %1708 = vmatprep.subr.mxu0 0.0
          %1709 = vmatpush2.msra.mxu0 0.0
          %1710 = vmatprep.subr.mxu0 0.0
          %1711 = vmatpush2.msra.mxu0 0.0
          %1712 = vmatprep.subr.mxu0 0.0
          %1713 = vmatpush2.msra.mxu0 0.0
          %1714 = vmatprep.subr.mxu0 0.0
          %1715 = vmatpush2.msra.mxu0 0.0
          %1716 = vmatprep.subr.mxu0 0.0
          %1717 = vmatpush2.msra.mxu0 0.0
          %1718 = vmatprep.subr.mxu0 0.0
          %1719 = vmatpush2.msra.mxu0 0.0
          %1720 = vmatprep.subr.mxu0 0.0
          %1721 = vmatpush2.msra.mxu0 0.0
          %1722 = vmatprep.subr.mxu0 0.0
          %1723 = vmatpush2.msra.mxu0 0.0
          %1724 = vmatprep.subr.mxu0 0.0
          %1725 = vmatpush2.msra.mxu0 0.0
          %1726 = vmatprep.subr.mxu0 0.0
          %1727 = vmatpush2.msra.mxu0 0.0
          %1728 = vmatprep.subr.mxu0 0.0
          %1729 = vmatpush2.msra.mxu0 0.0
          %1730 = vmatprep.subr.mxu0 0.0
          %1731 = vmatpush2.msra.mxu0 0.0
          %1732 = vmatprep.subr.mxu0 0.0
          %1733 = vmatpush2.msra.mxu0 0.0
          %1734 = vmatprep.mubr.f32.mxu0 0.0
          %1735 = vmatmul.mubr.f32.gmra.mxu0 %v1592
          %v1736 = vpop.f32.mrf.mxu0
          %v1737 = vadd.f32 %v742, %v1736
          %v1738 = vpop.f32.mrf.mxu0
          %1739 = vdwg.mxu0
          %v1740 = vadd.f32 %v1596, %v1666
          %v1741 = vxor.u32 %v1740, 2147483648
          %v1742 = vmul.f32 %v1741, 1.442695
          %v1743 = vpow.pop %v1742
          %v1744 = vadd.f32 %v1743, 1.0
          %v1745 = vrcp.pop %v1744
          %v1746 = vmul.f32 1.0, %v1745
          %v1747 = vadd.f32 %v1597, %v1668
          %v1748 = vxor.u32 %v1747, 2147483648
          %v1749 = vmul.f32 %v1748, 1.442695
          %v1750 = vpow.pop %v1749
          %v1751 = vadd.f32 %v1750, 1.0
          %v1752 = vrcp.pop %v1751
          %v1753 = vmul.f32 1.0, %v1752
          %v1754 = vmul.f32 %v1746, %v1737
          %v1755 = vadd.f32 %v1598, %v1754
          %v1756 = vtanh.pop %v1755
          %v1757 = vsub.f32 %v1592, %v1756
          %v1758 = vmul.f32 %v1753, %v1757
          %v1759 = vadd.f32 %v1756, %v1758
          %s1760 = scalar_lea.vmem %s409, 16 [#allocation12]
          %1761 = vst [vmem:[%s1760] sm:$0xff] %v1759
          %s1762 = scalar_lea.vmem [#allocation3], 24
          %v1763 = vld [vmem:[%s1762] sm:$0xff]
          %v1764 = vld [vmem:[%s1762 + $0x8] sm:$0xff]
          %v1765 = vld [vmem:[%s1762 + $0x10] sm:$0xff]
          %1766 = vmatprep.subr.mxu0 %v727
          %1767 = vmatpush1.msra.mxu0 %v726
          %1768 = vmatprep.subr.mxu0 %v724
          %1769 = vmatpush1.msra.mxu0 %v723
          %1770 = vmatprep.subr.mxu0 %v721
          %1771 = vmatpush1.msra.mxu0 %v720
          %1772 = vmatprep.subr.mxu0 %v718
          %1773 = vmatpush1.msra.mxu0 %v717
          %1774 = vmatprep.subr.mxu0 %v715
          %1775 = vmatpush1.msra.mxu0 %v714
          %1776 = vmatprep.subr.mxu0 %v712
          %1777 = vmatpush1.msra.mxu0 %v711
          %1778 = vmatprep.subr.mxu0 %v709
          %1779 = vmatpush1.msra.mxu0 %v708
          %1780 = vmatprep.subr.mxu0 %v706
          %1781 = vmatpush1.msra.mxu0 %v705
          %1782 = vmatprep.subr.mxu0 %v703
          %1783 = vmatpush1.msra.mxu0 %v702
          %1784 = vmatprep.subr.mxu0 %v700
          %1785 = vmatpush1.msra.mxu0 %v699
          %1786 = vmatprep.subr.mxu0 %v697
          %1787 = vmatpush1.msra.mxu0 %v696
          %1788 = vmatprep.subr.mxu0 %v694
          %1789 = vmatpush1.msra.mxu0 %v693
          %1790 = vmatprep.subr.mxu0 %v691
          %1791 = vmatpush1.msra.mxu0 %v690
          %1792 = vmatprep.subr.mxu0 %v688
          %1793 = vmatpush1.msra.mxu0 %v687
          %1794 = vmatprep.subr.mxu0 %v685
          %1795 = vmatpush1.msra.mxu0 %v684
          %1796 = vmatprep.subr.mxu0 %v682
          %1797 = vmatpush1.msra.mxu0 %v681
          %1798 = vmatprep.subr.mxu0 0.0
          %1799 = vmatpush2.msra.mxu0 0.0
          %1800 = vmatprep.subr.mxu0 0.0
          %1801 = vmatpush2.msra.mxu0 0.0
          %1802 = vmatprep.subr.mxu0 0.0
          %1803 = vmatpush2.msra.mxu0 0.0
          %1804 = vmatprep.subr.mxu0 0.0
          %1805 = vmatpush2.msra.mxu0 0.0
          %1806 = vmatprep.subr.mxu0 0.0
          %1807 = vmatpush2.msra.mxu0 0.0
          %1808 = vmatprep.subr.mxu0 0.0
          %1809 = vmatpush2.msra.mxu0 0.0
          %1810 = vmatprep.subr.mxu0 0.0
          %1811 = vmatpush2.msra.mxu0 0.0
          %1812 = vmatprep.subr.mxu0 0.0
          %1813 = vmatpush2.msra.mxu0 0.0
          %1814 = vmatprep.subr.mxu0 0.0
          %1815 = vmatpush2.msra.mxu0 0.0
          %1816 = vmatprep.subr.mxu0 0.0
          %1817 = vmatpush2.msra.mxu0 0.0
          %1818 = vmatprep.subr.mxu0 0.0
          %1819 = vmatpush2.msra.mxu0 0.0
          %1820 = vmatprep.subr.mxu0 0.0
          %1821 = vmatpush2.msra.mxu0 0.0
          %1822 = vmatprep.subr.mxu0 0.0
          %1823 = vmatpush2.msra.mxu0 0.0
          %1824 = vmatprep.subr.mxu0 0.0
          %1825 = vmatpush2.msra.mxu0 0.0
          %1826 = vmatprep.subr.mxu0 0.0
          %1827 = vmatpush2.msra.mxu0 0.0
          %1828 = vmatprep.subr.mxu0 0.0
          %1829 = vmatpush2.msra.mxu0 0.0
          %1830 = vmatprep.mubr.f32.mxu0 0.0
          %1831 = vmatmul.mubr.f32.gmra.mxu0 %v1759
          %v1832 = vpop.f32.mrf.mxu0
          %v1833 = vadd.f32 %v734, %v1832
          %v1834 = vpop.f32.mrf.mxu0
          %v1835 = vadd.f32 %v738, %v1834
          %1836 = vdwg.mxu0
          %1837 = vmatprep.subr.mxu0 0.0
          %1838 = vmatpush1.msra.mxu0 %v728
          %1839 = vmatprep.subr.mxu0 0.0
          %1840 = vmatpush1.msra.mxu0 %v725
          %1841 = vmatprep.subr.mxu0 0.0
          %1842 = vmatpush1.msra.mxu0 %v722
          %1843 = vmatprep.subr.mxu0 0.0
          %1844 = vmatpush1.msra.mxu0 %v719
          %1845 = vmatprep.subr.mxu0 0.0
          %1846 = vmatpush1.msra.mxu0 %v716
          %1847 = vmatprep.subr.mxu0 0.0
          %1848 = vmatpush1.msra.mxu0 %v713
          %1849 = vmatprep.subr.mxu0 0.0
          %1850 = vmatpush1.msra.mxu0 %v710
          %1851 = vmatprep.subr.mxu0 0.0
          %1852 = vmatpush1.msra.mxu0 %v707
          %1853 = vmatprep.subr.mxu0 0.0
          %1854 = vmatpush1.msra.mxu0 %v704
          %1855 = vmatprep.subr.mxu0 0.0
          %1856 = vmatpush1.msra.mxu0 %v701
          %1857 = vmatprep.subr.mxu0 0.0
          %1858 = vmatpush1.msra.mxu0 %v698
          %1859 = vmatprep.subr.mxu0 0.0
          %1860 = vmatpush1.msra.mxu0 %v695
          %1861 = vmatprep.subr.mxu0 0.0
          %1862 = vmatpush1.msra.mxu0 %v692
          %1863 = vmatprep.subr.mxu0 0.0
          %1864 = vmatpush1.msra.mxu0 %v689
          %1865 = vmatprep.subr.mxu0 0.0
          %1866 = vmatpush1.msra.mxu0 %v686
          %1867 = vmatprep.subr.mxu0 0.0
          %1868 = vmatpush1.msra.mxu0 %v683
          %1869 = vmatprep.subr.mxu0 0.0
          %1870 = vmatpush2.msra.mxu0 0.0
          %1871 = vmatprep.subr.mxu0 0.0
          %1872 = vmatpush2.msra.mxu0 0.0
          %1873 = vmatprep.subr.mxu0 0.0
          %1874 = vmatpush2.msra.mxu0 0.0
          %1875 = vmatprep.subr.mxu0 0.0
          %1876 = vmatpush2.msra.mxu0 0.0
          %1877 = vmatprep.subr.mxu0 0.0
          %1878 = vmatpush2.msra.mxu0 0.0
          %1879 = vmatprep.subr.mxu0 0.0
          %1880 = vmatpush2.msra.mxu0 0.0
          %1881 = vmatprep.subr.mxu0 0.0
          %1882 = vmatpush2.msra.mxu0 0.0
          %1883 = vmatprep.subr.mxu0 0.0
          %1884 = vmatpush2.msra.mxu0 0.0
          %1885 = vmatprep.subr.mxu0 0.0
          %1886 = vmatpush2.msra.mxu0 0.0
          %1887 = vmatprep.subr.mxu0 0.0
          %1888 = vmatpush2.msra.mxu0 0.0
          %1889 = vmatprep.subr.mxu0 0.0
          %1890 = vmatpush2.msra.mxu0 0.0
          %1891 = vmatprep.subr.mxu0 0.0
          %1892 = vmatpush2.msra.mxu0 0.0
          %1893 = vmatprep.subr.mxu0 0.0
          %1894 = vmatpush2.msra.mxu0 0.0
          %1895 = vmatprep.subr.mxu0 0.0
          %1896 = vmatpush2.msra.mxu0 0.0
          %1897 = vmatprep.subr.mxu0 0.0
          %1898 = vmatpush2.msra.mxu0 0.0
          %1899 = vmatprep.subr.mxu0 0.0
          %1900 = vmatpush2.msra.mxu0 0.0
          %1901 = vmatprep.mubr.f32.mxu0 0.0
          %1902 = vmatmul.mubr.f32.gmra.mxu0 %v1759
          %v1903 = vpop.f32.mrf.mxu0
          %v1904 = vadd.f32 %v742, %v1903
          %v1905 = vpop.f32.mrf.mxu0
          %1906 = vdwg.mxu0
          %v1907 = vadd.f32 %v1763, %v1833
          %v1908 = vxor.u32 %v1907, 2147483648
          %v1909 = vmul.f32 %v1908, 1.442695
          %v1910 = vpow.pop %v1909
          %v1911 = vadd.f32 %v1910, 1.0
          %v1912 = vrcp.pop %v1911
          %v1913 = vmul.f32 1.0, %v1912
          %v1914 = vadd.f32 %v1764, %v1835
          %v1915 = vxor.u32 %v1914, 2147483648
          %v1916 = vmul.f32 %v1915, 1.442695
          %v1917 = vpow.pop %v1916
          %v1918 = vadd.f32 %v1917, 1.0
          %v1919 = vrcp.pop %v1918
          %v1920 = vmul.f32 1.0, %v1919
          %v1921 = vmul.f32 %v1913, %v1904
          %v1922 = vadd.f32 %v1765, %v1921
          %v1923 = vtanh.pop %v1922
          %v1924 = vsub.f32 %v1759, %v1923
          %v1925 = vmul.f32 %v1920, %v1924
          %v1926 = vadd.f32 %v1923, %v1925
          %s1927 = scalar_lea.vmem %s409, 8 [#allocation12]
          %1928 = vst [vmem:[%s1927] sm:$0xff] %v1926
          %v1929 = vld [vmem:[#allocation3] sm:$0xff]
          %v1930 = vld [vmem:[#allocation3 + $0x8] sm:$0xff]
          %v1931 = vld [vmem:[#allocation3 + $0x10] sm:$0xff]
          %1932 = vmatprep.subr.mxu0 %v727
          %1933 = vmatpush1.msra.mxu0 %v726
          %1934 = vmatprep.subr.mxu0 %v724
          %1935 = vmatpush1.msra.mxu0 %v723
          %1936 = vmatprep.subr.mxu0 %v721
          %1937 = vmatpush1.msra.mxu0 %v720
          %1938 = vmatprep.subr.mxu0 %v718
          %1939 = vmatpush1.msra.mxu0 %v717
          %1940 = vmatprep.subr.mxu0 %v715
          %1941 = vmatpush1.msra.mxu0 %v714
          %1942 = vmatprep.subr.mxu0 %v712
          %1943 = vmatpush1.msra.mxu0 %v711
          %1944 = vmatprep.subr.mxu0 %v709
          %1945 = vmatpush1.msra.mxu0 %v708
          %1946 = vmatprep.subr.mxu0 %v706
          %1947 = vmatpush1.msra.mxu0 %v705
          %1948 = vmatprep.subr.mxu0 %v703
          %1949 = vmatpush1.msra.mxu0 %v702
          %1950 = vmatprep.subr.mxu0 %v700
          %1951 = vmatpush1.msra.mxu0 %v699
          %1952 = vmatprep.subr.mxu0 %v697
          %1953 = vmatpush1.msra.mxu0 %v696
          %1954 = vmatprep.subr.mxu0 %v694
          %1955 = vmatpush1.msra.mxu0 %v693
          %1956 = vmatprep.subr.mxu0 %v691
          %1957 = vmatpush1.msra.mxu0 %v690
          %1958 = vmatprep.subr.mxu0 %v688
          %1959 = vmatpush1.msra.mxu0 %v687
          %1960 = vmatprep.subr.mxu0 %v685
          %1961 = vmatpush1.msra.mxu0 %v684
          %1962 = vmatprep.subr.mxu0 %v682
          %1963 = vmatpush1.msra.mxu0 %v681
          %1964 = vmatprep.subr.mxu0 0.0
          %1965 = vmatpush2.msra.mxu0 0.0
          %1966 = vmatprep.subr.mxu0 0.0
          %1967 = vmatpush2.msra.mxu0 0.0
          %1968 = vmatprep.subr.mxu0 0.0
          %1969 = vmatpush2.msra.mxu0 0.0
          %1970 = vmatprep.subr.mxu0 0.0
          %1971 = vmatpush2.msra.mxu0 0.0
          %1972 = vmatprep.subr.mxu0 0.0
          %1973 = vmatpush2.msra.mxu0 0.0
          %1974 = vmatprep.subr.mxu0 0.0
          %1975 = vmatpush2.msra.mxu0 0.0
          %1976 = vmatprep.subr.mxu0 0.0
          %1977 = vmatpush2.msra.mxu0 0.0
          %1978 = vmatprep.subr.mxu0 0.0
          %1979 = vmatpush2.msra.mxu0 0.0
          %1980 = vmatprep.subr.mxu0 0.0
          %1981 = vmatpush2.msra.mxu0 0.0
          %1982 = vmatprep.subr.mxu0 0.0
          %1983 = vmatpush2.msra.mxu0 0.0
          %1984 = vmatprep.subr.mxu0 0.0
          %1985 = vmatpush2.msra.mxu0 0.0
          %1986 = vmatprep.subr.mxu0 0.0
          %1987 = vmatpush2.msra.mxu0 0.0
          %1988 = vmatprep.subr.mxu0 0.0
          %1989 = vmatpush2.msra.mxu0 0.0
          %1990 = vmatprep.subr.mxu0 0.0
          %1991 = vmatpush2.msra.mxu0 0.0
          %1992 = vmatprep.subr.mxu0 0.0
          %1993 = vmatpush2.msra.mxu0 0.0
          %1994 = vmatprep.subr.mxu0 0.0
          %1995 = vmatpush2.msra.mxu0 0.0
          %1996 = vmatprep.mubr.f32.mxu0 0.0
          %1997 = vmatmul.mubr.f32.gmra.mxu0 %v1926
          %v1998 = vpop.f32.mrf.mxu0
          %v1999 = vadd.f32 %v734, %v1998
          %v2000 = vpop.f32.mrf.mxu0
          %v2001 = vadd.f32 %v738, %v2000
          %2002 = vdwg.mxu0
          %2003 = vmatprep.subr.mxu0 0.0
          %2004 = vmatpush1.msra.mxu0 %v728
          %2005 = vmatprep.subr.mxu0 0.0
          %2006 = vmatpush1.msra.mxu0 %v725
          %2007 = vmatprep.subr.mxu0 0.0
          %2008 = vmatpush1.msra.mxu0 %v722
          %2009 = vmatprep.subr.mxu0 0.0
          %2010 = vmatpush1.msra.mxu0 %v719
          %2011 = vmatprep.subr.mxu0 0.0
          %2012 = vmatpush1.msra.mxu0 %v716
          %2013 = vmatprep.subr.mxu0 0.0
          %2014 = vmatpush1.msra.mxu0 %v713
          %2015 = vmatprep.subr.mxu0 0.0
          %2016 = vmatpush1.msra.mxu0 %v710
          %2017 = vmatprep.subr.mxu0 0.0
          %2018 = vmatpush1.msra.mxu0 %v707
          %2019 = vmatprep.subr.mxu0 0.0
          %2020 = vmatpush1.msra.mxu0 %v704
          %2021 = vmatprep.subr.mxu0 0.0
          %2022 = vmatpush1.msra.mxu0 %v701
          %2023 = vmatprep.subr.mxu0 0.0
          %2024 = vmatpush1.msra.mxu0 %v698
          %2025 = vmatprep.subr.mxu0 0.0
          %2026 = vmatpush1.msra.mxu0 %v695
          %2027 = vmatprep.subr.mxu0 0.0
          %2028 = vmatpush1.msra.mxu0 %v692
          %2029 = vmatprep.subr.mxu0 0.0
          %2030 = vmatpush1.msra.mxu0 %v689
          %2031 = vmatprep.subr.mxu0 0.0
          %2032 = vmatpush1.msra.mxu0 %v686
          %2033 = vmatprep.subr.mxu0 0.0
          %2034 = vmatpush1.msra.mxu0 %v683
          %2035 = vmatprep.subr.mxu0 0.0
          %2036 = vmatpush2.msra.mxu0 0.0
          %2037 = vmatprep.subr.mxu0 0.0
          %2038 = vmatpush2.msra.mxu0 0.0
          %2039 = vmatprep.subr.mxu0 0.0
          %2040 = vmatpush2.msra.mxu0 0.0
          %2041 = vmatprep.subr.mxu0 0.0
          %2042 = vmatpush2.msra.mxu0 0.0
          %2043 = vmatprep.subr.mxu0 0.0
          %2044 = vmatpush2.msra.mxu0 0.0
          %2045 = vmatprep.subr.mxu0 0.0
          %2046 = vmatpush2.msra.mxu0 0.0
          %2047 = vmatprep.subr.mxu0 0.0
          %2048 = vmatpush2.msra.mxu0 0.0
          %2049 = vmatprep.subr.mxu0 0.0
          %2050 = vmatpush2.msra.mxu0 0.0
          %2051 = vmatprep.subr.mxu0 0.0
          %2052 = vmatpush2.msra.mxu0 0.0
          %2053 = vmatprep.subr.mxu0 0.0
          %2054 = vmatpush2.msra.mxu0 0.0
          %2055 = vmatprep.subr.mxu0 0.0
          %2056 = vmatpush2.msra.mxu0 0.0
          %2057 = vmatprep.subr.mxu0 0.0
          %2058 = vmatpush2.msra.mxu0 0.0
          %2059 = vmatprep.subr.mxu0 0.0
          %2060 = vmatpush2.msra.mxu0 0.0
          %2061 = vmatprep.subr.mxu0 0.0
          %2062 = vmatpush2.msra.mxu0 0.0
          %2063 = vmatprep.subr.mxu0 0.0
          %2064 = vmatpush2.msra.mxu0 0.0
          %2065 = vmatprep.subr.mxu0 0.0
          %2066 = vmatpush2.msra.mxu0 0.0
          %2067 = vmatprep.mubr.f32.mxu0 0.0
          %2068 = vmatmul.mubr.f32.gmra.mxu0 %v1926
          %v2069 = vpop.f32.mrf.mxu0
          %v2070 = vadd.f32 %v742, %v2069
          %v2071 = vpop.f32.mrf.mxu0
          %2072 = vdwg.mxu0
          %v2073 = vadd.f32 %v1929, %v1999
          %v2074 = vxor.u32 %v2073, 2147483648
          %v2075 = vmul.f32 %v2074, 1.442695
          %v2076 = vpow.pop %v2075
          %v2077 = vadd.f32 %v2076, 1.0
          %v2078 = vrcp.pop %v2077
          %v2079 = vmul.f32 1.0, %v2078
          %v2080 = vadd.f32 %v1930, %v2001
          %v2081 = vxor.u32 %v2080, 2147483648
          %v2082 = vmul.f32 %v2081, 1.442695
          %v2083 = vpow.pop %v2082
          %v2084 = vadd.f32 %v2083, 1.0
          %v2085 = vrcp.pop %v2084
          %v2086 = vmul.f32 1.0, %v2085
          %v2087 = vmul.f32 %v2079, %v2070
          %v2088 = vadd.f32 %v1931, %v2087
          %v2089 = vtanh.pop %v2088
          %v2090 = vsub.f32 %v1926, %v2089
          %v2091 = vmul.f32 %v2086, %v2090
          %v2092 = vadd.f32 %v2089, %v2091
          %2093 = vst [vmem:[%s409] sm:$0xff] %v2092
          %2094 = vst [vmem:[#allocation2] sm:$0xff] %v2092
        $region68: #{tpu_custom_call.1} parent=39 // pred_fallthru
          _
        %s2095 = sand.u32 %s200, 1
        %s2096 = scalar_lea.sflag [#allocation6], %s2095
        %s2097 = sand.u32 %s200, 1
        %s2098 = smul.addr %s2097, 32
        %s2099 = scalar_lea.vmem [#allocation12], %s2098
        // Predicated region
        $region69: #{tpu_custom_call.1} parent=39 // pred_check
          %p2100 = pneg %p210
        $region70: #{tpu_custom_call.1} parent=39 // pred_check_branch
          %2102 = sbr.rel (%p2100) target = $region72
        $region71: #{tpu_custom_call.1} parent=39 // pred_region
          %s2103 = ssub.s32 1, %s32
          %s2104 = smul.u32 %s2103, %s33
          %s2105 = ssub.s32 1, %s33
          %s2106 = smul.u32 %s32, %s2105
          %s2107 = sadd.s32 %s2104, %s2106
          %s2108 = smul.u32 4, %s2107
          %s2110 = ssub.s32 512, 512
          %2111 = vsyncadd %s2096, %s2110
          %s2112 = smul.addr %s2108, 2
          %s2113 = sadd.s32 %s32, %s2112
          %s2114 = smul.addr %s2113, 128
          %s2115 = scalar_lea.hbm %s5, %s2114
          %s2116 = sshll.u32 %s2099, 4
          %s2117 = int_to_ptr.vmem [resolvable:$true] %s2116
          %2122 = dma.vmem_to_hbm [thread:$0]  %s2117, 512, %s2115, %s2096, 128, 256, 8
        $region72: #{tpu_custom_call.1} parent=39 // pred_fallthru
          _
      $region40: #{tpu_custom_call.1} parent=5 // pred_fallthru
        _
      %p2123 = scmp.le.s32.totalorder 2, %s23
      // Predicated region
      $region73: #{tpu_custom_call.1} parent=5 // pred_check
        %p2124 = pneg %p2123
      $region74: #{tpu_custom_call.1} parent=5 // pred_check_branch
        %2126 = sbr.rel (%p2124) target = $region76
      $region75: #{tpu_custom_call.1} parent=5 // pred_region
        %s2127 = ssub.s32 %s23, 2
        // Predicated region
        $region77: #{tpu_custom_call.1} parent=75 // pred_check
          %p2128 = pneg %p216
        $region78: #{tpu_custom_call.1} parent=75 // pred_check_branch
          %2130 = sbr.rel (%p2128) target = $region80
        $region79: #{tpu_custom_call.1} parent=75 // pred_region
          %s2131 = sand.u32 %s201, 1
          %s2132 = scalar_lea.sflag [#allocation6], %s2131
          %s2133 = sand.u32 %s201, 1
          %s2134 = smul.addr %s2133, 32
          %s2135 = scalar_lea.vmem [#allocation12], %s2134
          %2136 = dma.done %s2132, 512
        $region80: #{tpu_custom_call.1} parent=75 // pred_fallthru
          _
      $region76: #{tpu_custom_call.1} parent=5 // pred_fallthru
        _
    $region6: #{tpu_custom_call.1} parent=1 // loop_footer
      %s27 = sadd.s32 1, %s23
    $region7: #{tpu_custom_call.1} parent=1 // loop_footer_branch
      %22 = sbr.rel target = $region3
    $region8: #{tpu_custom_call.1} parent=1 // loop_exit
      _
    %2137 = vsyncpa [#allocation5], 1
    %s2138 = scalar_lea.sflag [#allocation5], 1
    %2139 = vsyncpa %s2138, 1
    %2140 = vsyncpa [#allocation8], 1
    %s2141 = scalar_lea.sflag [#allocation8], 1
    %2142 = vsyncpa %s2141, 1
    %2143 = vsyncpa [#allocation11], 1
    %s2144 = scalar_lea.sflag [#allocation11], 1
    %2145 = vsyncpa %s2144, 1
    %2146 = vsyncpa [#allocation6], 1
    %s2147 = scalar_lea.sflag [#allocation6], 1
    %2148 = vsyncpa %s2147, 1

</llo_original>
